<compile_context>
chip_gen: v6e
topology: v6e:2x2x1
jax: 0.10.0
libtpu: 0.0.40
codegen_flags: <defaults>
</compile_context>

<pallas_src>
import jax
import jax.numpy as jnp
from jax.experimental import pallas as pl
from jax.experimental.pallas import tpu as pltpu


def _round_up(n, m):
    return ((n + m - 1) // m) * m


def _fcn_kernel(x_ref,
                w1_ref, b1_ref,
                w2_ref, b2_ref,
                w3_ref, b3_ref,
                w4_ref, b4_ref,
                o_ref):
    """Fused 4x (Linear + ReLU) for one batch tile; weights VMEM-resident."""
    # Activations cast to bf16 at each dot input; accumulate in f32 on the MXU.
    # Bias-add + ReLU stay in f32 (VPU-friendly on all generations).
    h = x_ref[...]

    h = jnp.dot(h.astype(jnp.bfloat16), w1_ref[...],
                preferred_element_type=jnp.float32)
    h = jnp.maximum(h + b1_ref[...], 0.0)

    h = jnp.dot(h.astype(jnp.bfloat16), w2_ref[...],
                preferred_element_type=jnp.float32)
    h = jnp.maximum(h + b2_ref[...], 0.0)

    h = jnp.dot(h.astype(jnp.bfloat16), w3_ref[...],
                preferred_element_type=jnp.float32)
    h = jnp.maximum(h + b3_ref[...], 0.0)

    h = jnp.dot(h.astype(jnp.bfloat16), w4_ref[...],
                preferred_element_type=jnp.float32)
    h = jnp.maximum(h + b4_ref[...], 0.0)

    o_ref[...] = h.astype(o_ref.dtype)


def model_pretext_fcn_forward(x, params, *, tb=512):
    """Run the fused FCN kernel.

    x: (B, num_feat_in) float32
    params: dict with w1..w4 as (in, out) and b1..b4 as (1, out) float32.
    Returns (B, num_feat_out) float32.
    """
    B, fin = x.shape
    w1, b1 = params["w1"], params["b1"]
    w2, b2 = params["w2"], params["b2"]
    w3, b3 = params["w3"], params["b3"]
    w4, b4 = params["w4"], params["b4"]
    fout = w4.shape[1]

    # Lane-align the input/output feature axes (pad with zeros).
    fin_p = _round_up(fin, 128)
    fout_p = _round_up(fout, 128)

    # Batch tile: multiple of 8 sublanes, capped at `tb`; pad batch to a
    # multiple of the tile so every grid step sees a full tile.
    TB = min(tb, _round_up(B, 8))
    Bp = _round_up(B, TB)

    x_p = jnp.pad(x, ((0, Bp - B), (0, fin_p - fin))).astype(jnp.float32)

    # Weights as bf16 (MXU operands); biases stay f32 for the epilogue.
    w1_p = jnp.pad(w1, ((0, fin_p - fin), (0, 0))).astype(jnp.bfloat16)
    w2_b = w2.astype(jnp.bfloat16)
    w3_b = w3.astype(jnp.bfloat16)
    w4_p = jnp.pad(w4, ((0, 0), (0, fout_p - fout))).astype(jnp.bfloat16)
    b4_p = jnp.pad(b4, ((0, 0), (0, fout_p - fout))).astype(jnp.float32)
    b1_f = b1.astype(jnp.float32)
    b2_f = b2.astype(jnp.float32)
    b3_f = b3.astype(jnp.float32)

    grid = (pl.cdiv(Bp, TB),)

    def _tile_spec(feat):            # streamed per batch tile
        return pl.BlockSpec((TB, feat), lambda i: (i, 0))

    def _resident_spec(shape):       # weights/biases: same block every step
        return pl.BlockSpec(shape, lambda i: (0, 0))

    in_specs = [
        _tile_spec(fin_p),
        _resident_spec(w1_p.shape), _resident_spec(b1_f.shape),
        _resident_spec(w2_b.shape), _resident_spec(b2_f.shape),
        _resident_spec(w3_b.shape), _resident_spec(b3_f.shape),
        _resident_spec(w4_p.shape), _resident_spec(b4_p.shape),
    ]
    out_spec = _tile_spec(fout_p)

    flops = 2 * Bp * (fin_p * 1024 + 1024 * 512 + 512 * 128 + 128 * fout_p)
    bytes_accessed = (
        x_p.size * 4
        + (w1_p.size + w2_b.size + w3_b.size + w4_p.size) * 2
        + (b1_f.size + b2_f.size + b3_f.size + b4_p.size) * 4
        + Bp * fout_p * 4
    )

    out_padded = pl.pallas_call(
        _fcn_kernel,
        out_shape=jax.ShapeDtypeStruct((Bp, fout_p), jnp.float32),
        grid=grid,
        in_specs=in_specs,
        out_specs=out_spec,
        compiler_params=pltpu.CompilerParams(
            dimension_semantics=("parallel",)),
        cost_estimate=pl.CostEstimate(
            flops=flops, transcendentals=0, bytes_accessed=bytes_accessed),
    )(x_p, w1_p, b1_f, w2_b, b2_f, w3_b, b3_f, w4_p, b4_p)

    return out_padded[:B, :fout]


def init_params(key, num_feat_in, num_feat_out):
    """Deterministic init mimicking nn.Linear default (uniform +-1/sqrt(fan_in)).

    Weights are stored as (in_features, out_features); biases as (1, out)."""
    dims = [(num_feat_in, 1024), (1024, 512), (512, 128), (128, num_feat_out)]
    params = {}
    for i, (fan_in, fan_out) in enumerate(dims, start=1):
        key, kw, kb = jax.random.split(key, 3)
        bound = 1.0 / (fan_in ** 0.5)
        params[f"w{i}"] = jax.random.uniform(
            kw, (fan_in, fan_out), jnp.float32, -bound, bound)
        params[f"b{i}"] = jax.random.uniform(
            kb, (1, fan_out), jnp.float32, -bound, bound)
    return params


def reference_forward(x, params):
    """Pure-JAX reference matching the kernel's bf16-operand / f32-accumulate
    contract (weights and per-layer activations quantized to bf16)."""
    h = x
    for i in range(1, 5):
        w = params[f"w{i}"].astype(jnp.bfloat16).astype(jnp.float32)
        hq = h.astype(jnp.bfloat16).astype(jnp.float32)
        h = jnp.dot(hq, w, precision=jax.lax.Precision.HIGHEST)
        h = jnp.maximum(h + params[f"b{i}"], 0.0)
    return h


if __name__ == "__main__":
    num_feat_in = 32
    num_feat_out = 8
    batch = 2

    key = jax.random.PRNGKey(0)
    key, kx = jax.random.split(key)
    x = jax.random.normal(kx, (batch, num_feat_in), jnp.float32)
    params = init_params(key, num_feat_in, num_feat_out)

    out = model_pretext_fcn_forward(x, params)
    out = jax.block_until_ready(out)

    ref = reference_forward(x, params)
    assert out.shape == (batch, num_feat_out)
    assert jnp.allclose(out, ref, atol=1e-3, rtol=1e-3), "mismatch vs reference"

    print("KERNEL_OK")
</pallas_src>

<mosaic_0001>
module attributes {stable_mosaic.version = 11 : i64} {
  func.func @_fcn_kernel(%arg0: i32, %arg1: memref<8x128xf32, #tpu.memory_space<vmem>>, %arg2: memref<128x1024xbf16, #tpu.memory_space<vmem>>, %arg3: memref<1x1024xf32, #tpu.memory_space<vmem>>, %arg4: memref<1024x512xbf16, #tpu.memory_space<vmem>>, %arg5: memref<1x512xf32, #tpu.memory_space<vmem>>, %arg6: memref<512x128xbf16, #tpu.memory_space<vmem>>, %arg7: memref<1x128xf32, #tpu.memory_space<vmem>>, %arg8: memref<128x128xbf16, #tpu.memory_space<vmem>>, %arg9: memref<1x128xf32, #tpu.memory_space<vmem>>, %arg10: memref<8x128xf32, #tpu.memory_space<vmem>>) attributes {dimension_semantics = [#tpu.dimension_semantics<parallel>], iteration_bounds = array<i64: 1>, scalar_prefetch = 0 : i64, scratch_operands = 0 : i64, tpu.core_type = #tpu.core_type<tc>, window_params = [{transform_indices = @transform_0, window_bounds = array<i64: 8, 128>}, {pipeline_mode = #tpu.pipeline_mode<synchronous>, transform_indices = @transform_1, window_bounds = array<i64: 128, 1024>}, {pipeline_mode = #tpu.pipeline_mode<synchronous>, transform_indices = @transform_2, window_bounds = array<i64: 1, 1024>}, {pipeline_mode = #tpu.pipeline_mode<synchronous>, transform_indices = @transform_3, window_bounds = array<i64: 1024, 512>}, {pipeline_mode = #tpu.pipeline_mode<synchronous>, transform_indices = @transform_4, window_bounds = array<i64: 1, 512>}, {pipeline_mode = #tpu.pipeline_mode<synchronous>, transform_indices = @transform_5, window_bounds = array<i64: 512, 128>}, {pipeline_mode = #tpu.pipeline_mode<synchronous>, transform_indices = @transform_6, window_bounds = array<i64: 1, 128>}, {pipeline_mode = #tpu.pipeline_mode<synchronous>, transform_indices = @transform_7, window_bounds = array<i64: 128, 128>}, {pipeline_mode = #tpu.pipeline_mode<synchronous>, transform_indices = @transform_8, window_bounds = array<i64: 1, 128>}, {transform_indices = @transform_9, window_bounds = array<i64: 8, 128>}]} {
    %c0 = arith.constant 0 : index
    %c0_0 = arith.constant 0 : index
    %0 = vector.load %arg1[%c0, %c0_0] : memref<8x128xf32, #tpu.memory_space<vmem>>, vector<8x128xf32>
    %1 = arith.truncf %0 : vector<8x128xf32> to vector<8x128xbf16>
    %c0_1 = arith.constant 0 : index
    %c0_2 = arith.constant 0 : index
    %2 = vector.load %arg2[%c0_1, %c0_2] : memref<128x1024xbf16, #tpu.memory_space<vmem>>, vector<128x1024xbf16>
    %cst = arith.constant dense<0.000000e+00> : vector<8x1024xf32>
    %3 = tpu.matmul %1, %2, %cst {dimension_numbers = #tpu.dot_dimension_numbers<[1], [0], [0], [1], [0, 0, 1, 1], [], []>} : vector<8x128xbf16>, vector<128x1024xbf16>, vector<8x1024xf32> -> vector<8x1024xf32>
    %c0_3 = arith.constant 0 : index
    %c0_4 = arith.constant 0 : index
    %4 = vector.load %arg3[%c0_3, %c0_4] : memref<1x1024xf32, #tpu.memory_space<vmem>>, vector<1x1024xf32>
    %5 = vector.broadcast %4 : vector<1x1024xf32> to vector<8x1024xf32>
    %6 = arith.addf %3, %5 : vector<8x1024xf32>
    %cst_5 = arith.constant 0.000000e+00 : f32
    %7 = vector.broadcast %cst_5 : f32 to vector<8x1024xf32>
    %8 = arith.maximumf %6, %7 : vector<8x1024xf32>
    %9 = arith.truncf %8 : vector<8x1024xf32> to vector<8x1024xbf16>
    %c0_6 = arith.constant 0 : index
    %c0_7 = arith.constant 0 : index
    %10 = vector.load %arg4[%c0_6, %c0_7] : memref<1024x512xbf16, #tpu.memory_space<vmem>>, vector<1024x512xbf16>
    %cst_8 = arith.constant dense<0.000000e+00> : vector<8x512xf32>
    %11 = tpu.matmul %9, %10, %cst_8 {dimension_numbers = #tpu.dot_dimension_numbers<[1], [0], [0], [1], [0, 0, 1, 1], [], []>} : vector<8x1024xbf16>, vector<1024x512xbf16>, vector<8x512xf32> -> vector<8x512xf32>
    %c0_9 = arith.constant 0 : index
    %c0_10 = arith.constant 0 : index
    %12 = vector.load %arg5[%c0_9, %c0_10] : memref<1x512xf32, #tpu.memory_space<vmem>>, vector<1x512xf32>
    %13 = vector.broadcast %12 : vector<1x512xf32> to vector<8x512xf32>
    %14 = arith.addf %11, %13 : vector<8x512xf32>
    %cst_11 = arith.constant 0.000000e+00 : f32
    %15 = vector.broadcast %cst_11 : f32 to vector<8x512xf32>
    %16 = arith.maximumf %14, %15 : vector<8x512xf32>
    %17 = arith.truncf %16 : vector<8x512xf32> to vector<8x512xbf16>
    %c0_12 = arith.constant 0 : index
    %c0_13 = arith.constant 0 : index
    %18 = vector.load %arg6[%c0_12, %c0_13] : memref<512x128xbf16, #tpu.memory_space<vmem>>, vector<512x128xbf16>
    %cst_14 = arith.constant dense<0.000000e+00> : vector<8x128xf32>
    %19 = tpu.matmul %17, %18, %cst_14 {dimension_numbers = #tpu.dot_dimension_numbers<[1], [0], [0], [1], [0, 0, 1, 1], [], []>} : vector<8x512xbf16>, vector<512x128xbf16>, vector<8x128xf32> -> vector<8x128xf32>
    %c0_15 = arith.constant 0 : index
    %c0_16 = arith.constant 0 : index
    %20 = vector.load %arg7[%c0_15, %c0_16] : memref<1x128xf32, #tpu.memory_space<vmem>>, vector<1x128xf32>
    %21 = vector.broadcast %20 : vector<1x128xf32> to vector<8x128xf32>
    %22 = arith.addf %19, %21 : vector<8x128xf32>
    %cst_17 = arith.constant 0.000000e+00 : f32
    %23 = vector.broadcast %cst_17 : f32 to vector<8x128xf32>
    %24 = arith.maximumf %22, %23 : vector<8x128xf32>
    %25 = arith.truncf %24 : vector<8x128xf32> to vector<8x128xbf16>
    %c0_18 = arith.constant 0 : index
    %c0_19 = arith.constant 0 : index
    %26 = vector.load %arg8[%c0_18, %c0_19] : memref<128x128xbf16, #tpu.memory_space<vmem>>, vector<128x128xbf16>
    %cst_20 = arith.constant dense<0.000000e+00> : vector<8x128xf32>
    %27 = tpu.matmul %25, %26, %cst_20 {dimension_numbers = #tpu.dot_dimension_numbers<[1], [0], [0], [1], [0, 0, 1, 1], [], []>} : vector<8x128xbf16>, vector<128x128xbf16>, vector<8x128xf32> -> vector<8x128xf32>
    %c0_21 = arith.constant 0 : index
    %c0_22 = arith.constant 0 : index
    %28 = vector.load %arg9[%c0_21, %c0_22] : memref<1x128xf32, #tpu.memory_space<vmem>>, vector<1x128xf32>
    %29 = vector.broadcast %28 : vector<1x128xf32> to vector<8x128xf32>
    %30 = arith.addf %27, %29 : vector<8x128xf32>
    %cst_23 = arith.constant 0.000000e+00 : f32
    %31 = vector.broadcast %cst_23 : f32 to vector<8x128xf32>
    %32 = arith.maximumf %30, %31 : vector<8x128xf32>
    %c0_24 = arith.constant 0 : index
    %c0_25 = arith.constant 0 : index
    %33 = vector.load %arg10[%c0_24, %c0_25] : memref<8x128xf32, #tpu.memory_space<vmem>>, vector<8x128xf32>
    tpu.vector_store %arg10[%c0_24, %c0_25], %32 {strides = array<i32>} : memref<8x128xf32, #tpu.memory_space<vmem>>, vector<8x128xf32>,
    return
  }
  func.func @transform_0(%arg0: i32) -> (i32, i32) {
    %c0_i32 = arith.constant 0 : i32
    %c0_i32_0 = arith.constant 0 : i32
    return %arg0, %c0_i32 : i32, i32
  }
  func.func @transform_1(%arg0: i32) -> (i32, i32) {
    %c0_i32 = arith.constant 0 : i32
    %c0_i32_0 = arith.constant 0 : i32
    %c0_i32_1 = arith.constant 0 : i32
    return %c0_i32, %c0_i32_0 : i32, i32
  }
  func.func @transform_2(%arg0: i32) -> (i32, i32) {
    %c0_i32 = arith.constant 0 : i32
    %c0_i32_0 = arith.constant 0 : i32
    %c0_i32_1 = arith.constant 0 : i32
    return %c0_i32, %c0_i32_0 : i32, i32
  }
  func.func @transform_3(%arg0: i32) -> (i32, i32) {
    %c0_i32 = arith.constant 0 : i32
    %c0_i32_0 = arith.constant 0 : i32
    %c0_i32_1 = arith.constant 0 : i32
    return %c0_i32, %c0_i32_0 : i32, i32
  }
  func.func @transform_4(%arg0: i32) -> (i32, i32) {
    %c0_i32 = arith.constant 0 : i32
    %c0_i32_0 = arith.constant 0 : i32
    %c0_i32_1 = arith.constant 0 : i32
    return %c0_i32, %c0_i32_0 : i32, i32
  }
  func.func @transform_5(%arg0: i32) -> (i32, i32) {
    %c0_i32 = arith.constant 0 : i32
    %c0_i32_0 = arith.constant 0 : i32
    %c0_i32_1 = arith.constant 0 : i32
    return %c0_i32, %c0_i32_0 : i32, i32
  }
  func.func @transform_6(%arg0: i32) -> (i32, i32) {
    %c0_i32 = arith.constant 0 : i32
    %c0_i32_0 = arith.constant 0 : i32
    %c0_i32_1 = arith.constant 0 : i32
    return %c0_i32, %c0_i32_0 : i32, i32
  }
  func.func @transform_7(%arg0: i32) -> (i32, i32) {
    %c0_i32 = arith.constant 0 : i32
    %c0_i32_0 = arith.constant 0 : i32
    %c0_i32_1 = arith.constant 0 : i32
    return %c0_i32, %c0_i32_0 : i32, i32
  }
  func.func @transform_8(%arg0: i32) -> (i32, i32) {
    %c0_i32 = arith.constant 0 : i32
    %c0_i32_0 = arith.constant 0 : i32
    %c0_i32_1 = arith.constant 0 : i32
    return %c0_i32, %c0_i32_0 : i32, i32
  }
  func.func @transform_9(%arg0: i32) -> (i32, i32) {
    %c0_i32 = arith.constant 0 : i32
    %c0_i32_0 = arith.constant 0 : i32
    return %arg0, %c0_i32 : i32, i32
  }
}

</mosaic_0001>

<llo_original>
// kernel: tpu_custom_call.1
$region0: #{tpu_custom_call.1}
  #allocation0 [shape = 'u32[]', space=smem, size = 0x4, offset = 0x4, fixed_abs, tag = 'smem constant byte address 0x4 - core index']
  #allocation1 [shape = 'u32[144,128]{1,0:T(1,128)}', space=vmem, size = 0x12000, scoped, tag = 'internal scratch']
  %s0 = inlined_call_operand.hbm [shape: f32[8,128], index: 0, kind: input, shape index: {}]
  %s1 = inlined_call_operand.hbm [shape: bf16[128,1024], index: 1, kind: input, shape index: {}]
  %s2 = inlined_call_operand.hbm [shape: f32[1,1024], index: 2, kind: input, shape index: {}]
  %s3 = inlined_call_operand.hbm [shape: bf16[1024,512], index: 3, kind: input, shape index: {}]
  %s4 = inlined_call_operand.vmem [shape: f32[1,512], index: 4, kind: input, shape index: {}]
  %s5 = inlined_call_operand.hbm [shape: bf16[512,128], index: 5, kind: input, shape index: {}]
  %s6 = inlined_call_operand.vmem [shape: f32[1,128], index: 6, kind: input, shape index: {}]
  %s7 = inlined_call_operand.hbm [shape: bf16[128,128], index: 7, kind: input, shape index: {}]
  %s8 = inlined_call_operand.vmem [shape: f32[1,128], index: 8, kind: input, shape index: {}]
  %s9 = inlined_call_operand.hbm [shape: f32[8,128], index: 9, kind: output, shape index: {}]
  %s10 = sld [smem:[#allocation0]]
  $region70: #{tpu_custom_call.1} parent=0
    _
  %s12 = ssub.s32 1, %s10
  %s13 = scalar_select 0, %s12, %s10
  $region1: #{tpu_custom_call.1} parent=0
    #allocation2 [shape = 'u8[4096]{0}', space=vmem, size = 0x1000, scoped, tag = 'input window, operand 0, single buffered']
    #allocation3 [shape = 's32[1]{0}', space=sflag, size = 0x4, scoped, tag = 'scoped memory for tpu_custom_call.1']
    #allocation4 [shape = 's32[1]{0}', space=sflag, size = 0x4, scoped, tag = 'scoped memory for tpu_custom_call.1']
    #allocation5 [shape = 'u8[262144]{0}', space=vmem, size = 0x40000, scoped, tag = 'input window, operand 1, single buffered']
    #allocation6 [shape = 's32[1]{0}', space=sflag, size = 0x4, scoped, tag = 'scoped memory for tpu_custom_call.1']
    #allocation7 [shape = 'u8[4096]{0}', space=vmem, size = 0x1000, scoped, tag = 'input window, operand 2, single buffered']
    #allocation8 [shape = 'u8[1048576]{0}', space=vmem, size = 0x100000, scoped, tag = 'input window, operand 3, single buffered']
    #allocation9 [shape = 's32[1]{0}', space=sflag, size = 0x4, scoped, tag = 'scoped memory for tpu_custom_call.1']
    #allocation10 [shape = 'u8[131072]{0}', space=vmem, size = 0x20000, scoped, tag = 'input window, operand 5, single buffered']
    #allocation11 [shape = 'u8[32768]{0}', space=vmem, size = 0x8000, scoped, tag = 'input window, operand 7, single buffered']
    #allocation12 [shape = 's32[1]{0}', space=sflag, size = 0x4, scoped, tag = 'scoped memory for tpu_custom_call.1']
    #allocation13 [shape = 'u8[4096]{0}', space=vmem, size = 0x1000, scoped, tag = 'output window, operand 0, single buffered']
    %14 = vsyncpa [#allocation3], 0
    %15 = vsyncpa [#allocation6], 0
    %16 = vsyncpa [#allocation9], 0
    %17 = vsyncpa [#allocation12], 0
    %18 = vsyncpa [#allocation4], 0
    // Predicated region
    $region2: #{tpu_custom_call.1} parent=1 // pred_check
      _
    $region3: #{tpu_custom_call.1} parent=1 // pred_check_branch
      %20 = sbr.rel (0) target = $region5
    $region4: #{tpu_custom_call.1} parent=1 // pred_region
      %s22 = ssub.s32 128, 128
      %23 = vsyncadd [#allocation3], %s22
      %s25 = sshll.u32 [#allocation2], 4
      %s26 = int_to_ptr.vmem [resolvable:$true] %s25
      %28 = dma.hbm_to_vmem [thread:$0]  %s0, 128, %s26, [#allocation3]
    $region5: #{tpu_custom_call.1} parent=1 // pred_fallthru
      _
    // Predicated region
    $region6: #{tpu_custom_call.1} parent=1 // pred_check
      _
    $region7: #{tpu_custom_call.1} parent=1 // pred_check_branch
      %30 = sbr.rel (0) target = $region9
    $region8: #{tpu_custom_call.1} parent=1 // pred_region
      %s32 = ssub.s32 8192, 8192
      %33 = vsyncadd [#allocation6], %s32
      %s34 = sshll.u32 [#allocation5], 4
      %s35 = int_to_ptr.vmem [resolvable:$true] %s34
      %40 = dma.hbm_to_vmem [thread:$0]  %s1, 8192, %s35, [#allocation6], 512, 512, 32
    $region9: #{tpu_custom_call.1} parent=1 // pred_fallthru
      _
    // Predicated region
    $region10: #{tpu_custom_call.1} parent=1 // pred_check
      _
    $region11: #{tpu_custom_call.1} parent=1 // pred_check_branch
      %42 = sbr.rel (0) target = $region13
    $region12: #{tpu_custom_call.1} parent=1 // pred_region
      %s44 = ssub.s32 128, 128
      %45 = vsyncadd [#allocation6], %s44
      %s47 = sshll.u32 [#allocation7], 4
      %s48 = int_to_ptr.vmem [resolvable:$true] %s47
      %50 = dma.hbm_to_vmem [thread:$0]  %s2, 128, %s48, [#allocation6]
    $region13: #{tpu_custom_call.1} parent=1 // pred_fallthru
      _
    // Predicated region
    $region14: #{tpu_custom_call.1} parent=1 // pred_check
      _
    $region15: #{tpu_custom_call.1} parent=1 // pred_check_branch
      %52 = sbr.rel (0) target = $region17
    $region16: #{tpu_custom_call.1} parent=1 // pred_region
      %s54 = ssub.s32 32768, 32768
      %55 = vsyncadd [#allocation9], %s54
      %s56 = sshll.u32 [#allocation8], 4
      %s57 = int_to_ptr.vmem [resolvable:$true] %s56
      %62 = dma.hbm_to_vmem [thread:$0]  %s3, 32768, %s57, [#allocation9], 256, 256, 16
    $region17: #{tpu_custom_call.1} parent=1 // pred_fallthru
      _
    // Predicated region
    $region18: #{tpu_custom_call.1} parent=1 // pred_check
      _
    $region19: #{tpu_custom_call.1} parent=1 // pred_check_branch
      %64 = sbr.rel (0) target = $region21
    $region20: #{tpu_custom_call.1} parent=1 // pred_region
      _
    $region21: #{tpu_custom_call.1} parent=1 // pred_fallthru
      _
    // Predicated region
    $region22: #{tpu_custom_call.1} parent=1 // pred_check
      _
    $region23: #{tpu_custom_call.1} parent=1 // pred_check_branch
      %66 = sbr.rel (0) target = $region25
    $region24: #{tpu_custom_call.1} parent=1 // pred_region
      %s68 = ssub.s32 4096, 4096
      %69 = vsyncadd [#allocation9], %s68
      %s70 = sshll.u32 [#allocation10], 4
      %s71 = int_to_ptr.vmem [resolvable:$true] %s70
      %76 = dma.hbm_to_vmem [thread:$0]  %s5, 4096, %s71, [#allocation9], 64, 64, 4
    $region25: #{tpu_custom_call.1} parent=1 // pred_fallthru
      _
    // Predicated region
    $region26: #{tpu_custom_call.1} parent=1 // pred_check
      _
    $region27: #{tpu_custom_call.1} parent=1 // pred_check_branch
      %78 = sbr.rel (0) target = $region29
    $region28: #{tpu_custom_call.1} parent=1 // pred_region
      _
    $region29: #{tpu_custom_call.1} parent=1 // pred_fallthru
      _
    // Predicated region
    $region30: #{tpu_custom_call.1} parent=1 // pred_check
      _
    $region31: #{tpu_custom_call.1} parent=1 // pred_check_branch
      %80 = sbr.rel (0) target = $region33
    $region32: #{tpu_custom_call.1} parent=1 // pred_region
      %s82 = ssub.s32 1024, 1024
      %83 = vsyncadd [#allocation12], %s82
      %s84 = sshll.u32 [#allocation11], 4
      %s85 = int_to_ptr.vmem [resolvable:$true] %s84
      %90 = dma.hbm_to_vmem [thread:$0]  %s7, 1024, %s85, [#allocation12], 64, 64, 4
    $region33: #{tpu_custom_call.1} parent=1 // pred_fallthru
      _
    // Predicated region
    $region34: #{tpu_custom_call.1} parent=1 // pred_check
      _
    $region35: #{tpu_custom_call.1} parent=1 // pred_check_branch
      %92 = sbr.rel (0) target = $region37
    $region36: #{tpu_custom_call.1} parent=1 // pred_region
      _
    $region37: #{tpu_custom_call.1} parent=1 // pred_fallthru
      _
    // Predicated region
    $region38: #{tpu_custom_call.1} parent=1 // pred_check
      _
    $region39: #{tpu_custom_call.1} parent=1 // pred_check_branch
      %94 = sbr.rel (0) target = $region41
    $region40: #{tpu_custom_call.1} parent=1 // pred_region
      %95 = dma.done [#allocation3], 128
    $region41: #{tpu_custom_call.1} parent=1 // pred_fallthru
      _
    // Predicated region
    $region42: #{tpu_custom_call.1} parent=1 // pred_check
      _
    $region43: #{tpu_custom_call.1} parent=1 // pred_check_branch
      %97 = sbr.rel (0) target = $region45
    $region44: #{tpu_custom_call.1} parent=1 // pred_region
      %98 = dma.done [#allocation6], 8192
    $region45: #{tpu_custom_call.1} parent=1 // pred_fallthru
      _
    // Predicated region
    $region46: #{tpu_custom_call.1} parent=1 // pred_check
      _
    $region47: #{tpu_custom_call.1} parent=1 // pred_check_branch
      %100 = sbr.rel (0) target = $region49
    $region48: #{tpu_custom_call.1} parent=1 // pred_region
      %101 = dma.done [#allocation6], 128
    $region49: #{tpu_custom_call.1} parent=1 // pred_fallthru
      _
    // Predicated region
    $region50: #{tpu_custom_call.1} parent=1 // pred_check
      _
    $region51: #{tpu_custom_call.1} parent=1 // pred_check_branch
      %103 = sbr.rel (0) target = $region53
    $region52: #{tpu_custom_call.1} parent=1 // pred_region
      %104 = dma.done [#allocation9], 32768
    $region53: #{tpu_custom_call.1} parent=1 // pred_fallthru
      _
    // Predicated region
    $region54: #{tpu_custom_call.1} parent=1 // pred_check
      _
    $region55: #{tpu_custom_call.1} parent=1 // pred_check_branch
      %106 = sbr.rel (0) target = $region57
    $region56: #{tpu_custom_call.1} parent=1 // pred_region
      %107 = dma.done [#allocation9], 4096
    $region57: #{tpu_custom_call.1} parent=1 // pred_fallthru
      _
    // Predicated region
    $region58: #{tpu_custom_call.1} parent=1 // pred_check
      _
    $region59: #{tpu_custom_call.1} parent=1 // pred_check_branch
      %109 = sbr.rel (0) target = $region61
    $region60: #{tpu_custom_call.1} parent=1 // pred_region
      %110 = dma.done [#allocation12], 1024
    $region61: #{tpu_custom_call.1} parent=1 // pred_fallthru
      _
    %v112 = vld [vmem:[#allocation2] sm:$0xff]
    %v113 = vpack.c.bf16 %v112, %v112
    %v114 = vld [vmem:[#allocation5] sm:$0xff]
    %v115 = vld [vmem:[#allocation5 + $0x8] sm:$0xff]
    %v116 = vld [vmem:[#allocation5 + $0x10] sm:$0xff]
    %v117 = vld [vmem:[#allocation5 + $0x18] sm:$0xff]
    %v118 = vld [vmem:[#allocation5 + $0x20] sm:$0xff]
    %v119 = vld [vmem:[#allocation5 + $0x28] sm:$0xff]
    %v120 = vld [vmem:[#allocation5 + $0x30] sm:$0xff]
    %v121 = vld [vmem:[#allocation5 + $0x38] sm:$0xff]
    %v122 = vld [vmem:[#allocation5 + $0x40] sm:$0xff]
    %v123 = vld [vmem:[#allocation5 + $0x48] sm:$0xff]
    %v124 = vld [vmem:[#allocation5 + $0x50] sm:$0xff]
    %v125 = vld [vmem:[#allocation5 + $0x58] sm:$0xff]
    %v126 = vld [vmem:[#allocation5 + $0x60] sm:$0xff]
    %v127 = vld [vmem:[#allocation5 + $0x68] sm:$0xff]
    %v128 = vld [vmem:[#allocation5 + $0x70] sm:$0xff]
    %v129 = vld [vmem:[#allocation5 + $0x78] sm:$0xff]
    %v130 = vld [vmem:[#allocation5 + $0x80] sm:$0xff]
    %v131 = vld [vmem:[#allocation5 + $0x88] sm:$0xff]
    %v132 = vld [vmem:[#allocation5 + $0x90] sm:$0xff]
    %v133 = vld [vmem:[#allocation5 + $0x98] sm:$0xff]
    %v134 = vld [vmem:[#allocation5 + $0xa0] sm:$0xff]
    %v135 = vld [vmem:[#allocation5 + $0xa8] sm:$0xff]
    %v136 = vld [vmem:[#allocation5 + $0xb0] sm:$0xff]
    %v137 = vld [vmem:[#allocation5 + $0xb8] sm:$0xff]
    %v138 = vld [vmem:[#allocation5 + $0xc0] sm:$0xff]
    %v139 = vld [vmem:[#allocation5 + $0xc8] sm:$0xff]
    %v140 = vld [vmem:[#allocation5 + $0xd0] sm:$0xff]
    %v141 = vld [vmem:[#allocation5 + $0xd8] sm:$0xff]
    %v142 = vld [vmem:[#allocation5 + $0xe0] sm:$0xff]
    %v143 = vld [vmem:[#allocation5 + $0xe8] sm:$0xff]
    %v144 = vld [vmem:[#allocation5 + $0xf0] sm:$0xff]
    %v145 = vld [vmem:[#allocation5 + $0xf8] sm:$0xff]
    %v146 = vld [vmem:[#allocation5 + $0x100] sm:$0xff]
    %v147 = vld [vmem:[#allocation5 + $0x108] sm:$0xff]
    %v148 = vld [vmem:[#allocation5 + $0x110] sm:$0xff]
    %v149 = vld [vmem:[#allocation5 + $0x118] sm:$0xff]
    %v150 = vld [vmem:[#allocation5 + $0x120] sm:$0xff]
    %v151 = vld [vmem:[#allocation5 + $0x128] sm:$0xff]
    %v152 = vld [vmem:[#allocation5 + $0x130] sm:$0xff]
    %v153 = vld [vmem:[#allocation5 + $0x138] sm:$0xff]
    %v154 = vld [vmem:[#allocation5 + $0x140] sm:$0xff]
    %v155 = vld [vmem:[#allocation5 + $0x148] sm:$0xff]
    %v156 = vld [vmem:[#allocation5 + $0x150] sm:$0xff]
    %v157 = vld [vmem:[#allocation5 + $0x158] sm:$0xff]
    %v158 = vld [vmem:[#allocation5 + $0x160] sm:$0xff]
    %v159 = vld [vmem:[#allocation5 + $0x168] sm:$0xff]
    %v160 = vld [vmem:[#allocation5 + $0x170] sm:$0xff]
    %v161 = vld [vmem:[#allocation5 + $0x178] sm:$0xff]
    %v162 = vld [vmem:[#allocation5 + $0x180] sm:$0xff]
    %v163 = vld [vmem:[#allocation5 + $0x188] sm:$0xff]
    %v164 = vld [vmem:[#allocation5 + $0x190] sm:$0xff]
    %v165 = vld [vmem:[#allocation5 + $0x198] sm:$0xff]
    %v166 = vld [vmem:[#allocation5 + $0x1a0] sm:$0xff]
    %v167 = vld [vmem:[#allocation5 + $0x1a8] sm:$0xff]
    %v168 = vld [vmem:[#allocation5 + $0x1b0] sm:$0xff]
    %v169 = vld [vmem:[#allocation5 + $0x1b8] sm:$0xff]
    %v170 = vld [vmem:[#allocation5 + $0x1c0] sm:$0xff]
    %v171 = vld [vmem:[#allocation5 + $0x1c8] sm:$0xff]
    %v172 = vld [vmem:[#allocation5 + $0x1d0] sm:$0xff]
    %v173 = vld [vmem:[#allocation5 + $0x1d8] sm:$0xff]
    %v174 = vld [vmem:[#allocation5 + $0x1e0] sm:$0xff]
    %v175 = vld [vmem:[#allocation5 + $0x1e8] sm:$0xff]
    %v176 = vld [vmem:[#allocation5 + $0x1f0] sm:$0xff]
    %v177 = vld [vmem:[#allocation5 + $0x1f8] sm:$0xff]
    %v178 = vld [vmem:[#allocation7] sm:$0xff]
    %v180 = vlaneseq
    %v181 = vshrl.u32 %v180, 7
    %v182 = vsub.s32 0, %v181
    %v183 = vrot.slane %v178, %v182
    %v184 = vlaneseq
    %v185 = vshrl.u32 %v184, 7
    %v186 = vsub.s32 1, %v185
    %v187 = vrot.slane %v178, %v186
    %v188 = vlaneseq
    %v189 = vshrl.u32 %v188, 7
    %v190 = vsub.s32 2, %v189
    %v191 = vrot.slane %v178, %v190
    %v192 = vlaneseq
    %v193 = vshrl.u32 %v192, 7
    %v194 = vsub.s32 3, %v193
    %v195 = vrot.slane %v178, %v194
    %v196 = vlaneseq
    %v197 = vshrl.u32 %v196, 7
    %v198 = vsub.s32 4, %v197
    %v199 = vrot.slane %v178, %v198
    %v200 = vlaneseq
    %v201 = vshrl.u32 %v200, 7
    %v202 = vsub.s32 5, %v201
    %v203 = vrot.slane %v178, %v202
    %v204 = vlaneseq
    %v205 = vshrl.u32 %v204, 7
    %v206 = vsub.s32 6, %v205
    %v207 = vrot.slane %v178, %v206
    %v208 = vlaneseq
    %v209 = vshrl.u32 %v208, 7
    %v210 = vsub.s32 7, %v209
    %v211 = vrot.slane %v178, %v210
    %v284 = vunpack.c.l.b16 %v114
    %v285 = vunpack.c.h.b16 %v114
    %v286 = vunpack.c.l.b16 %v115
    %v287 = vunpack.c.h.b16 %v115
    %v288 = vunpack.c.l.b16 %v116
    %v289 = vunpack.c.h.b16 %v116
    %v290 = vunpack.c.l.b16 %v117
    %v291 = vunpack.c.h.b16 %v117
    %v292 = vunpack.c.l.b16 %v118
    %v293 = vunpack.c.h.b16 %v118
    %v294 = vunpack.c.l.b16 %v119
    %v295 = vunpack.c.h.b16 %v119
    %v296 = vunpack.c.l.b16 %v120
    %v297 = vunpack.c.h.b16 %v120
    %v298 = vunpack.c.l.b16 %v121
    %v299 = vunpack.c.h.b16 %v121
    %v300 = vunpack.c.l.b16 %v122
    %v301 = vunpack.c.h.b16 %v122
    %v302 = vunpack.c.l.b16 %v123
    %v303 = vunpack.c.h.b16 %v123
    %v304 = vunpack.c.l.b16 %v124
    %v305 = vunpack.c.h.b16 %v124
    %v306 = vunpack.c.l.b16 %v125
    %v307 = vunpack.c.h.b16 %v125
    %v308 = vunpack.c.l.b16 %v126
    %v309 = vunpack.c.h.b16 %v126
    %v310 = vunpack.c.l.b16 %v127
    %v311 = vunpack.c.h.b16 %v127
    %v312 = vunpack.c.l.b16 %v128
    %v313 = vunpack.c.h.b16 %v128
    %v314 = vunpack.c.l.b16 %v129
    %v315 = vunpack.c.h.b16 %v129
    %v316 = vunpack.c.l.b16 %v130
    %v317 = vunpack.c.h.b16 %v130
    %v318 = vunpack.c.l.b16 %v131
    %v319 = vunpack.c.h.b16 %v131
    %v320 = vunpack.c.l.b16 %v132
    %v321 = vunpack.c.h.b16 %v132
    %v322 = vunpack.c.l.b16 %v133
    %v323 = vunpack.c.h.b16 %v133
    %v324 = vunpack.c.l.b16 %v134
    %v325 = vunpack.c.h.b16 %v134
    %v326 = vunpack.c.l.b16 %v135
    %v327 = vunpack.c.h.b16 %v135
    %v328 = vunpack.c.l.b16 %v136
    %v329 = vunpack.c.h.b16 %v136
    %v330 = vunpack.c.l.b16 %v137
    %v331 = vunpack.c.h.b16 %v137
    %v332 = vunpack.c.l.b16 %v138
    %v333 = vunpack.c.h.b16 %v138
    %v334 = vunpack.c.l.b16 %v139
    %v335 = vunpack.c.h.b16 %v139
    %v336 = vunpack.c.l.b16 %v140
    %v337 = vunpack.c.h.b16 %v140
    %v338 = vunpack.c.l.b16 %v141
    %v339 = vunpack.c.h.b16 %v141
    %v340 = vunpack.c.l.b16 %v142
    %v341 = vunpack.c.h.b16 %v142
    %v342 = vunpack.c.l.b16 %v143
    %v343 = vunpack.c.h.b16 %v143
    %v344 = vunpack.c.l.b16 %v144
    %v345 = vunpack.c.h.b16 %v144
    %v346 = vunpack.c.l.b16 %v145
    %v347 = vunpack.c.h.b16 %v145
    %v348 = vunpack.c.l.b16 %v146
    %v349 = vunpack.c.h.b16 %v146
    %v350 = vunpack.c.l.b16 %v147
    %v351 = vunpack.c.h.b16 %v147
    %v352 = vunpack.c.l.b16 %v148
    %v353 = vunpack.c.h.b16 %v148
    %v354 = vunpack.c.l.b16 %v149
    %v355 = vunpack.c.h.b16 %v149
    %v356 = vunpack.c.l.b16 %v150
    %v357 = vunpack.c.h.b16 %v150
    %v358 = vunpack.c.l.b16 %v151
    %v359 = vunpack.c.h.b16 %v151
    %v360 = vunpack.c.l.b16 %v152
    %v361 = vunpack.c.h.b16 %v152
    %v362 = vunpack.c.l.b16 %v153
    %v363 = vunpack.c.h.b16 %v153
    %v364 = vunpack.c.l.b16 %v154
    %v365 = vunpack.c.h.b16 %v154
    %v366 = vunpack.c.l.b16 %v155
    %v367 = vunpack.c.h.b16 %v155
    %v368 = vunpack.c.l.b16 %v156
    %v369 = vunpack.c.h.b16 %v156
    %v370 = vunpack.c.l.b16 %v157
    %v371 = vunpack.c.h.b16 %v157
    %v372 = vunpack.c.l.b16 %v158
    %v373 = vunpack.c.h.b16 %v158
    %v374 = vunpack.c.l.b16 %v159
    %v375 = vunpack.c.h.b16 %v159
    %v376 = vunpack.c.l.b16 %v160
    %v377 = vunpack.c.h.b16 %v160
    %v378 = vunpack.c.l.b16 %v161
    %v379 = vunpack.c.h.b16 %v161
    %v380 = vunpack.c.l.b16 %v162
    %v381 = vunpack.c.h.b16 %v162
    %v382 = vunpack.c.l.b16 %v163
    %v383 = vunpack.c.h.b16 %v163
    %v384 = vunpack.c.l.b16 %v164
    %v385 = vunpack.c.h.b16 %v164
    %v386 = vunpack.c.l.b16 %v165
    %v387 = vunpack.c.h.b16 %v165
    %v388 = vunpack.c.l.b16 %v166
    %v389 = vunpack.c.h.b16 %v166
    %v390 = vunpack.c.l.b16 %v167
    %v391 = vunpack.c.h.b16 %v167
    %v392 = vunpack.c.l.b16 %v168
    %v393 = vunpack.c.h.b16 %v168
    %v394 = vunpack.c.l.b16 %v169
    %v395 = vunpack.c.h.b16 %v169
    %v396 = vunpack.c.l.b16 %v170
    %v397 = vunpack.c.h.b16 %v170
    %v398 = vunpack.c.l.b16 %v171
    %v399 = vunpack.c.h.b16 %v171
    %v400 = vunpack.c.l.b16 %v172
    %v401 = vunpack.c.h.b16 %v172
    %v402 = vunpack.c.l.b16 %v173
    %v403 = vunpack.c.h.b16 %v173
    %v404 = vunpack.c.l.b16 %v174
    %v405 = vunpack.c.h.b16 %v174
    %v406 = vunpack.c.l.b16 %v175
    %v407 = vunpack.c.h.b16 %v175
    %v408 = vunpack.c.l.b16 %v176
    %v409 = vunpack.c.h.b16 %v176
    %v410 = vunpack.c.l.b16 %v177
    %v411 = vunpack.c.h.b16 %v177
    %v412 = vpack.c.b16 %v292, %v284
    %v413 = vpack.c.b16 %v293, %v285
    %v414 = vpack.c.b16 %v294, %v286
    %v415 = vpack.c.b16 %v295, %v287
    %v416 = vpack.c.b16 %v296, %v288
    %v417 = vpack.c.b16 %v297, %v289
    %v418 = vpack.c.b16 %v298, %v290
    %v419 = vpack.c.b16 %v299, %v291
    %v420 = vpack.c.b16 %v308, %v300
    %v421 = vpack.c.b16 %v309, %v301
    %v422 = vpack.c.b16 %v310, %v302
    %v423 = vpack.c.b16 %v311, %v303
    %v424 = vpack.c.b16 %v312, %v304
    %v425 = vpack.c.b16 %v313, %v305
    %v426 = vpack.c.b16 %v314, %v306
    %v427 = vpack.c.b16 %v315, %v307
    %v428 = vpack.c.b16 %v324, %v316
    %v429 = vpack.c.b16 %v325, %v317
    %v430 = vpack.c.b16 %v326, %v318
    %v431 = vpack.c.b16 %v327, %v319
    %v432 = vpack.c.b16 %v328, %v320
    %v433 = vpack.c.b16 %v329, %v321
    %v434 = vpack.c.b16 %v330, %v322
    %v435 = vpack.c.b16 %v331, %v323
    %v436 = vpack.c.b16 %v340, %v332
    %v437 = vpack.c.b16 %v341, %v333
    %v438 = vpack.c.b16 %v342, %v334
    %v439 = vpack.c.b16 %v343, %v335
    %v440 = vpack.c.b16 %v344, %v336
    %v441 = vpack.c.b16 %v345, %v337
    %v442 = vpack.c.b16 %v346, %v338
    %v443 = vpack.c.b16 %v347, %v339
    %v444 = vpack.c.b16 %v356, %v348
    %v445 = vpack.c.b16 %v357, %v349
    %v446 = vpack.c.b16 %v358, %v350
    %v447 = vpack.c.b16 %v359, %v351
    %v448 = vpack.c.b16 %v360, %v352
    %v449 = vpack.c.b16 %v361, %v353
    %v450 = vpack.c.b16 %v362, %v354
    %v451 = vpack.c.b16 %v363, %v355
    %v452 = vpack.c.b16 %v372, %v364
    %v453 = vpack.c.b16 %v373, %v365
    %v454 = vpack.c.b16 %v374, %v366
    %v455 = vpack.c.b16 %v375, %v367
    %v456 = vpack.c.b16 %v376, %v368
    %v457 = vpack.c.b16 %v377, %v369
    %v458 = vpack.c.b16 %v378, %v370
    %v459 = vpack.c.b16 %v379, %v371
    %v460 = vpack.c.b16 %v388, %v380
    %v461 = vpack.c.b16 %v389, %v381
    %v462 = vpack.c.b16 %v390, %v382
    %v463 = vpack.c.b16 %v391, %v383
    %v464 = vpack.c.b16 %v392, %v384
    %v465 = vpack.c.b16 %v393, %v385
    %v466 = vpack.c.b16 %v394, %v386
    %v467 = vpack.c.b16 %v395, %v387
    %v468 = vpack.c.b16 %v404, %v396
    %v469 = vpack.c.b16 %v405, %v397
    %v470 = vpack.c.b16 %v406, %v398
    %v471 = vpack.c.b16 %v407, %v399
    %v472 = vpack.c.b16 %v408, %v400
    %v473 = vpack.c.b16 %v409, %v401
    %v474 = vpack.c.b16 %v410, %v402
    %v475 = vpack.c.b16 %v411, %v403
    %540 = vmatprep.subr.bf16.mxu0 %v469
    %541 = vmatpush1.bf16.msra.mxu0 %v468
    %542 = vmatprep.subr.bf16.mxu0 %v461
    %543 = vmatpush1.bf16.msra.mxu0 %v460
    %544 = vmatprep.subr.bf16.mxu0 %v453
    %545 = vmatpush1.bf16.msra.mxu0 %v452
    %546 = vmatprep.subr.bf16.mxu0 %v445
    %547 = vmatpush1.bf16.msra.mxu0 %v444
    %548 = vmatprep.subr.bf16.mxu0 %v437
    %549 = vmatpush1.bf16.msra.mxu0 %v436
    %550 = vmatprep.subr.bf16.mxu0 %v429
    %551 = vmatpush1.bf16.msra.mxu0 %v428
    %552 = vmatprep.subr.bf16.mxu0 %v421
    %553 = vmatpush1.bf16.msra.mxu0 %v420
    %554 = vmatprep.subr.bf16.mxu0 %v413
    %555 = vmatpush1.bf16.msra.mxu0 %v412
    %556 = vmatprep.subr.bf16.mxu0 0
    %557 = vmatpush2.bf16.msra.mxu0 0
    %558 = vmatprep.subr.bf16.mxu0 0
    %559 = vmatpush2.bf16.msra.mxu0 0
    %560 = vmatprep.subr.bf16.mxu0 0
    %561 = vmatpush2.bf16.msra.mxu0 0
    %562 = vmatprep.subr.bf16.mxu0 0
    %563 = vmatpush2.bf16.msra.mxu0 0
    %564 = vmatprep.subr.bf16.mxu0 0
    %565 = vmatpush2.bf16.msra.mxu0 0
    %566 = vmatprep.subr.bf16.mxu0 0
    %567 = vmatpush2.bf16.msra.mxu0 0
    %568 = vmatprep.subr.bf16.mxu0 0
    %569 = vmatpush2.bf16.msra.mxu0 0
    %570 = vmatprep.subr.bf16.mxu0 0
    %571 = vmatpush2.bf16.msra.mxu0 0
    %572 = vmatprep.mubr.bf16.mxu0 0
    %573 = vmatmul.mubr.bf16.gmra.mxu0 %v113
    %v574 = vpop.f32.mrf.mxu0
    %v575 = vadd.f32 %v183, %v574
    %v576 = vpop.f32.mrf.mxu0
    %v577 = vadd.f32 %v187, %v576
    %v578 = vpop.f32.mrf.mxu0
    %v579 = vpop.f32.mrf.mxu0
    %580 = vdwg.mxu0
    %581 = vmatprep.subr.bf16.mxu0 %v471
    %582 = vmatpush1.bf16.msra.mxu0 %v470
    %583 = vmatprep.subr.bf16.mxu0 %v463
    %584 = vmatpush1.bf16.msra.mxu0 %v462
    %585 = vmatprep.subr.bf16.mxu0 %v455
    %586 = vmatpush1.bf16.msra.mxu0 %v454
    %587 = vmatprep.subr.bf16.mxu0 %v447
    %588 = vmatpush1.bf16.msra.mxu0 %v446
    %589 = vmatprep.subr.bf16.mxu0 %v439
    %590 = vmatpush1.bf16.msra.mxu0 %v438
    %591 = vmatprep.subr.bf16.mxu0 %v431
    %592 = vmatpush1.bf16.msra.mxu0 %v430
    %593 = vmatprep.subr.bf16.mxu0 %v423
    %594 = vmatpush1.bf16.msra.mxu0 %v422
    %595 = vmatprep.subr.bf16.mxu0 %v415
    %596 = vmatpush1.bf16.msra.mxu0 %v414
    %597 = vmatprep.subr.bf16.mxu0 0
    %598 = vmatpush2.bf16.msra.mxu0 0
    %599 = vmatprep.subr.bf16.mxu0 0
    %600 = vmatpush2.bf16.msra.mxu0 0
    %601 = vmatprep.subr.bf16.mxu0 0
    %602 = vmatpush2.bf16.msra.mxu0 0
    %603 = vmatprep.subr.bf16.mxu0 0
    %604 = vmatpush2.bf16.msra.mxu0 0
    %605 = vmatprep.subr.bf16.mxu0 0
    %606 = vmatpush2.bf16.msra.mxu0 0
    %607 = vmatprep.subr.bf16.mxu0 0
    %608 = vmatpush2.bf16.msra.mxu0 0
    %609 = vmatprep.subr.bf16.mxu0 0
    %610 = vmatpush2.bf16.msra.mxu0 0
    %611 = vmatprep.subr.bf16.mxu0 0
    %612 = vmatpush2.bf16.msra.mxu0 0
    %613 = vmatprep.mubr.bf16.mxu0 0
    %614 = vmatmul.mubr.bf16.gmra.mxu0 %v113
    %v615 = vpop.f32.mrf.mxu0
    %v616 = vadd.f32 %v191, %v615
    %v617 = vpop.f32.mrf.mxu0
    %v618 = vadd.f32 %v195, %v617
    %v619 = vpop.f32.mrf.mxu0
    %v620 = vpop.f32.mrf.mxu0
    %621 = vdwg.mxu0
    %622 = vmatprep.subr.bf16.mxu0 %v473
    %623 = vmatpush1.bf16.msra.mxu0 %v472
    %624 = vmatprep.subr.bf16.mxu0 %v465
    %625 = vmatpush1.bf16.msra.mxu0 %v464
    %626 = vmatprep.subr.bf16.mxu0 %v457
    %627 = vmatpush1.bf16.msra.mxu0 %v456
    %628 = vmatprep.subr.bf16.mxu0 %v449
    %629 = vmatpush1.bf16.msra.mxu0 %v448
    %630 = vmatprep.subr.bf16.mxu0 %v441
    %631 = vmatpush1.bf16.msra.mxu0 %v440
    %632 = vmatprep.subr.bf16.mxu0 %v433
    %633 = vmatpush1.bf16.msra.mxu0 %v432
    %634 = vmatprep.subr.bf16.mxu0 %v425
    %635 = vmatpush1.bf16.msra.mxu0 %v424
    %636 = vmatprep.subr.bf16.mxu0 %v417
    %637 = vmatpush1.bf16.msra.mxu0 %v416
    %638 = vmatprep.subr.bf16.mxu0 0
    %639 = vmatpush2.bf16.msra.mxu0 0
    %640 = vmatprep.subr.bf16.mxu0 0
    %641 = vmatpush2.bf16.msra.mxu0 0
    %642 = vmatprep.subr.bf16.mxu0 0
    %643 = vmatpush2.bf16.msra.mxu0 0
    %644 = vmatprep.subr.bf16.mxu0 0
    %645 = vmatpush2.bf16.msra.mxu0 0
    %646 = vmatprep.subr.bf16.mxu0 0
    %647 = vmatpush2.bf16.msra.mxu0 0
    %648 = vmatprep.subr.bf16.mxu0 0
    %649 = vmatpush2.bf16.msra.mxu0 0
    %650 = vmatprep.subr.bf16.mxu0 0
    %651 = vmatpush2.bf16.msra.mxu0 0
    %652 = vmatprep.subr.bf16.mxu0 0
    %653 = vmatpush2.bf16.msra.mxu0 0
    %654 = vmatprep.mubr.bf16.mxu0 0
    %655 = vmatmul.mubr.bf16.gmra.mxu0 %v113
    %v656 = vpop.f32.mrf.mxu0
    %v657 = vadd.f32 %v199, %v656
    %v658 = vpop.f32.mrf.mxu0
    %v659 = vadd.f32 %v203, %v658
    %v660 = vpop.f32.mrf.mxu0
    %v661 = vpop.f32.mrf.mxu0
    %662 = vdwg.mxu0
    %663 = vmatprep.subr.bf16.mxu0 %v475
    %664 = vmatpush1.bf16.msra.mxu0 %v474
    %665 = vmatprep.subr.bf16.mxu0 %v467
    %666 = vmatpush1.bf16.msra.mxu0 %v466
    %667 = vmatprep.subr.bf16.mxu0 %v459
    %668 = vmatpush1.bf16.msra.mxu0 %v458
    %669 = vmatprep.subr.bf16.mxu0 %v451
    %670 = vmatpush1.bf16.msra.mxu0 %v450
    %671 = vmatprep.subr.bf16.mxu0 %v443
    %672 = vmatpush1.bf16.msra.mxu0 %v442
    %673 = vmatprep.subr.bf16.mxu0 %v435
    %674 = vmatpush1.bf16.msra.mxu0 %v434
    %675 = vmatprep.subr.bf16.mxu0 %v427
    %676 = vmatpush1.bf16.msra.mxu0 %v426
    %677 = vmatprep.subr.bf16.mxu0 %v419
    %678 = vmatpush1.bf16.msra.mxu0 %v418
    %679 = vmatprep.subr.bf16.mxu0 0
    %680 = vmatpush2.bf16.msra.mxu0 0
    %681 = vmatprep.subr.bf16.mxu0 0
    %682 = vmatpush2.bf16.msra.mxu0 0
    %683 = vmatprep.subr.bf16.mxu0 0
    %684 = vmatpush2.bf16.msra.mxu0 0
    %685 = vmatprep.subr.bf16.mxu0 0
    %686 = vmatpush2.bf16.msra.mxu0 0
    %687 = vmatprep.subr.bf16.mxu0 0
    %688 = vmatpush2.bf16.msra.mxu0 0
    %689 = vmatprep.subr.bf16.mxu0 0
    %690 = vmatpush2.bf16.msra.mxu0 0
    %691 = vmatprep.subr.bf16.mxu0 0
    %692 = vmatpush2.bf16.msra.mxu0 0
    %693 = vmatprep.subr.bf16.mxu0 0
    %694 = vmatpush2.bf16.msra.mxu0 0
    %695 = vmatprep.mubr.bf16.mxu0 0
    %696 = vmatmul.mubr.bf16.gmra.mxu0 %v113
    %v697 = vpop.f32.mrf.mxu0
    %v698 = vadd.f32 %v207, %v697
    %v699 = vpop.f32.mrf.mxu0
    %v700 = vadd.f32 %v211, %v699
    %v701 = vpop.f32.mrf.mxu0
    %v702 = vpop.f32.mrf.mxu0
    %703 = vdwg.mxu0
    %v704 = vmax.f32 %v575, 0.0
    %v705 = vmax.f32 %v577, 0.0
    %v706 = vmax.f32 %v616, 0.0
    %v707 = vmax.f32 %v618, 0.0
    %v708 = vmax.f32 %v657, 0.0
    %v709 = vmax.f32 %v659, 0.0
    %v710 = vmax.f32 %v698, 0.0
    %v711 = vmax.f32 %v700, 0.0
    %v712 = vpack.c.bf16 %v704, %v704
    %v713 = vpack.c.bf16 %v705, %v705
    %v714 = vpack.c.bf16 %v706, %v706
    %v715 = vpack.c.bf16 %v707, %v707
    %v716 = vpack.c.bf16 %v708, %v708
    %v717 = vpack.c.bf16 %v709, %v709
    %v718 = vpack.c.bf16 %v710, %v710
    %v719 = vpack.c.bf16 %v711, %v711
    %v720 = vld [vmem:[#allocation8] sm:$0xff]
    %v721 = vld [vmem:[#allocation8 + $0x8] sm:$0xff]
    %v722 = vld [vmem:[#allocation8 + $0x10] sm:$0xff]
    %v723 = vld [vmem:[#allocation8 + $0x18] sm:$0xff]
    %v724 = vld [vmem:[#allocation8 + $0x20] sm:$0xff]
    %v725 = vld [vmem:[#allocation8 + $0x28] sm:$0xff]
    %v726 = vld [vmem:[#allocation8 + $0x30] sm:$0xff]
    %v727 = vld [vmem:[#allocation8 + $0x38] sm:$0xff]
    %v728 = vld [vmem:[#allocation8 + $0x40] sm:$0xff]
    %v729 = vld [vmem:[#allocation8 + $0x48] sm:$0xff]
    %v730 = vld [vmem:[#allocation8 + $0x50] sm:$0xff]
    %v731 = vld [vmem:[#allocation8 + $0x58] sm:$0xff]
    %v732 = vld [vmem:[#allocation8 + $0x60] sm:$0xff]
    %v733 = vld [vmem:[#allocation8 + $0x68] sm:$0xff]
    %v734 = vld [vmem:[#allocation8 + $0x70] sm:$0xff]
    %v735 = vld [vmem:[#allocation8 + $0x78] sm:$0xff]
    %v736 = vld [vmem:[#allocation8 + $0x80] sm:$0xff]
    %v737 = vld [vmem:[#allocation8 + $0x88] sm:$0xff]
    %v738 = vld [vmem:[#allocation8 + $0x90] sm:$0xff]
    %v739 = vld [vmem:[#allocation8 + $0x98] sm:$0xff]
    %v740 = vld [vmem:[#allocation8 + $0xa0] sm:$0xff]
    %v741 = vld [vmem:[#allocation8 + $0xa8] sm:$0xff]
    %v742 = vld [vmem:[#allocation8 + $0xb0] sm:$0xff]
    %v743 = vld [vmem:[#allocation8 + $0xb8] sm:$0xff]
    %v744 = vld [vmem:[#allocation8 + $0xc0] sm:$0xff]
    %v745 = vld [vmem:[#allocation8 + $0xc8] sm:$0xff]
    %v746 = vld [vmem:[#allocation8 + $0xd0] sm:$0xff]
    %v747 = vld [vmem:[#allocation8 + $0xd8] sm:$0xff]
    %v748 = vld [vmem:[#allocation8 + $0xe0] sm:$0xff]
    %v749 = vld [vmem:[#allocation8 + $0xe8] sm:$0xff]
    %v750 = vld [vmem:[#allocation8 + $0xf0] sm:$0xff]
    %v751 = vld [vmem:[#allocation8 + $0xf8] sm:$0xff]
    %v752 = vld [vmem:[#allocation8 + $0x100] sm:$0xff]
    %v753 = vld [vmem:[#allocation8 + $0x108] sm:$0xff]
    %v754 = vld [vmem:[#allocation8 + $0x110] sm:$0xff]
    %v755 = vld [vmem:[#allocation8 + $0x118] sm:$0xff]
    %v756 = vld [vmem:[#allocation8 + $0x120] sm:$0xff]
    %v757 = vld [vmem:[#allocation8 + $0x128] sm:$0xff]
    %v758 = vld [vmem:[#allocation8 + $0x130] sm:$0xff]
    %v759 = vld [vmem:[#allocation8 + $0x138] sm:$0xff]
    %v760 = vld [vmem:[#allocation8 + $0x140] sm:$0xff]
    %v761 = vld [vmem:[#allocation8 + $0x148] sm:$0xff]
    %v762 = vld [vmem:[#allocation8 + $0x150] sm:$0xff]
    %v763 = vld [vmem:[#allocation8 + $0x158] sm:$0xff]
    %v764 = vld [vmem:[#allocation8 + $0x160] sm:$0xff]
    %v765 = vld [vmem:[#allocation8 + $0x168] sm:$0xff]
    %v766 = vld [vmem:[#allocation8 + $0x170] sm:$0xff]
    %v767 = vld [vmem:[#allocation8 + $0x178] sm:$0xff]
    %v768 = vld [vmem:[#allocation8 + $0x180] sm:$0xff]
    %v769 = vld [vmem:[#allocation8 + $0x188] sm:$0xff]
    %v770 = vld [vmem:[#allocation8 + $0x190] sm:$0xff]
    %v771 = vld [vmem:[#allocation8 + $0x198] sm:$0xff]
    %v772 = vld [vmem:[#allocation8 + $0x1a0] sm:$0xff]
    %v773 = vld [vmem:[#allocation8 + $0x1a8] sm:$0xff]
    %v774 = vld [vmem:[#allocation8 + $0x1b0] sm:$0xff]
    %v775 = vld [vmem:[#allocation8 + $0x1b8] sm:$0xff]
    %v776 = vld [vmem:[#allocation8 + $0x1c0] sm:$0xff]
    %v777 = vld [vmem:[#allocation8 + $0x1c8] sm:$0xff]
    %v778 = vld [vmem:[#allocation8 + $0x1d0] sm:$0xff]
    %v779 = vld [vmem:[#allocation8 + $0x1d8] sm:$0xff]
    %v780 = vld [vmem:[#allocation8 + $0x1e0] sm:$0xff]
    %v781 = vld [vmem:[#allocation8 + $0x1e8] sm:$0xff]
    %v782 = vld [vmem:[#allocation8 + $0x1f0] sm:$0xff]
    %v783 = vld [vmem:[#allocation8 + $0x1f8] sm:$0xff]
    %v784 = vld [vmem:[#allocation8 + $0x200] sm:$0xff]
    %v785 = vld [vmem:[#allocation8 + $0x208] sm:$0xff]
    %v786 = vld [vmem:[#allocation8 + $0x210] sm:$0xff]
    %v787 = vld [vmem:[#allocation8 + $0x218] sm:$0xff]
    %v788 = vld [vmem:[#allocation8 + $0x220] sm:$0xff]
    %v789 = vld [vmem:[#allocation8 + $0x228] sm:$0xff]
    %v790 = vld [vmem:[#allocation8 + $0x230] sm:$0xff]
    %v791 = vld [vmem:[#allocation8 + $0x238] sm:$0xff]
    %v792 = vld [vmem:[#allocation8 + $0x240] sm:$0xff]
    %v793 = vld [vmem:[#allocation8 + $0x248] sm:$0xff]
    %v794 = vld [vmem:[#allocation8 + $0x250] sm:$0xff]
    %v795 = vld [vmem:[#allocation8 + $0x258] sm:$0xff]
    %v796 = vld [vmem:[#allocation8 + $0x260] sm:$0xff]
    %v797 = vld [vmem:[#allocation8 + $0x268] sm:$0xff]
    %v798 = vld [vmem:[#allocation8 + $0x270] sm:$0xff]
    %v799 = vld [vmem:[#allocation8 + $0x278] sm:$0xff]
    %v800 = vld [vmem:[#allocation8 + $0x280] sm:$0xff]
    %v801 = vld [vmem:[#allocation8 + $0x288] sm:$0xff]
    %v802 = vld [vmem:[#allocation8 + $0x290] sm:$0xff]
    %v803 = vld [vmem:[#allocation8 + $0x298] sm:$0xff]
    %v804 = vld [vmem:[#allocation8 + $0x2a0] sm:$0xff]
    %v805 = vld [vmem:[#allocation8 + $0x2a8] sm:$0xff]
    %v806 = vld [vmem:[#allocation8 + $0x2b0] sm:$0xff]
    %v807 = vld [vmem:[#allocation8 + $0x2b8] sm:$0xff]
    %v808 = vld [vmem:[#allocation8 + $0x2c0] sm:$0xff]
    %v809 = vld [vmem:[#allocation8 + $0x2c8] sm:$0xff]
    %v810 = vld [vmem:[#allocation8 + $0x2d0] sm:$0xff]
    %v811 = vld [vmem:[#allocation8 + $0x2d8] sm:$0xff]
    %v812 = vld [vmem:[#allocation8 + $0x2e0] sm:$0xff]
    %v813 = vld [vmem:[#allocation8 + $0x2e8] sm:$0xff]
    %v814 = vld [vmem:[#allocation8 + $0x2f0] sm:$0xff]
    %v815 = vld [vmem:[#allocation8 + $0x2f8] sm:$0xff]
    %v816 = vld [vmem:[#allocation8 + $0x300] sm:$0xff]
    %v817 = vld [vmem:[#allocation8 + $0x308] sm:$0xff]
    %v818 = vld [vmem:[#allocation8 + $0x310] sm:$0xff]
    %v819 = vld [vmem:[#allocation8 + $0x318] sm:$0xff]
    %v820 = vld [vmem:[#allocation8 + $0x320] sm:$0xff]
    %v821 = vld [vmem:[#allocation8 + $0x328] sm:$0xff]
    %v822 = vld [vmem:[#allocation8 + $0x330] sm:$0xff]
    %v823 = vld [vmem:[#allocation8 + $0x338] sm:$0xff]
    %v824 = vld [vmem:[#allocation8 + $0x340] sm:$0xff]
    %v825 = vld [vmem:[#allocation8 + $0x348] sm:$0xff]
    %v826 = vld [vmem:[#allocation8 + $0x350] sm:$0xff]
    %v827 = vld [vmem:[#allocation8 + $0x358] sm:$0xff]
    %v828 = vld [vmem:[#allocation8 + $0x360] sm:$0xff]
    %v829 = vld [vmem:[#allocation8 + $0x368] sm:$0xff]
    %v830 = vld [vmem:[#allocation8 + $0x370] sm:$0xff]
    %v831 = vld [vmem:[#allocation8 + $0x378] sm:$0xff]
    %v832 = vld [vmem:[#allocation8 + $0x380] sm:$0xff]
    %v833 = vld [vmem:[#allocation8 + $0x388] sm:$0xff]
    %v834 = vld [vmem:[#allocation8 + $0x390] sm:$0xff]
    %v835 = vld [vmem:[#allocation8 + $0x398] sm:$0xff]
    %v836 = vld [vmem:[#allocation8 + $0x3a0] sm:$0xff]
    %v837 = vld [vmem:[#allocation8 + $0x3a8] sm:$0xff]
    %v838 = vld [vmem:[#allocation8 + $0x3b0] sm:$0xff]
    %v839 = vld [vmem:[#allocation8 + $0x3b8] sm:$0xff]
    %v840 = vld [vmem:[#allocation8 + $0x3c0] sm:$0xff]
    %v841 = vld [vmem:[#allocation8 + $0x3c8] sm:$0xff]
    %v842 = vld [vmem:[#allocation8 + $0x3d0] sm:$0xff]
    %v843 = vld [vmem:[#allocation8 + $0x3d8] sm:$0xff]
    %v844 = vld [vmem:[#allocation8 + $0x3e0] sm:$0xff]
    %v845 = vld [vmem:[#allocation8 + $0x3e8] sm:$0xff]
    %v846 = vld [vmem:[#allocation8 + $0x3f0] sm:$0xff]
    %v847 = vld [vmem:[#allocation8 + $0x3f8] sm:$0xff]
    %v848 = vld [vmem:[#allocation8 + $0x400] sm:$0xff]
    %v849 = vld [vmem:[#allocation8 + $0x408] sm:$0xff]
    %v850 = vld [vmem:[#allocation8 + $0x410] sm:$0xff]
    %v851 = vld [vmem:[#allocation8 + $0x418] sm:$0xff]
    %v852 = vld [vmem:[#allocation8 + $0x420] sm:$0xff]
    %v853 = vld [vmem:[#allocation8 + $0x428] sm:$0xff]
    %v854 = vld [vmem:[#allocation8 + $0x430] sm:$0xff]
    %v855 = vld [vmem:[#allocation8 + $0x438] sm:$0xff]
    %v856 = vld [vmem:[#allocation8 + $0x440] sm:$0xff]
    %v857 = vld [vmem:[#allocation8 + $0x448] sm:$0xff]
    %v858 = vld [vmem:[#allocation8 + $0x450] sm:$0xff]
    %v859 = vld [vmem:[#allocation8 + $0x458] sm:$0xff]
    %v860 = vld [vmem:[#allocation8 + $0x460] sm:$0xff]
    %v861 = vld [vmem:[#allocation8 + $0x468] sm:$0xff]
    %v862 = vld [vmem:[#allocation8 + $0x470] sm:$0xff]
    %v863 = vld [vmem:[#allocation8 + $0x478] sm:$0xff]
    %v864 = vld [vmem:[#allocation8 + $0x480] sm:$0xff]
    %v865 = vld [vmem:[#allocation8 + $0x488] sm:$0xff]
    %v866 = vld [vmem:[#allocation8 + $0x490] sm:$0xff]
    %v867 = vld [vmem:[#allocation8 + $0x498] sm:$0xff]
    %v868 = vld [vmem:[#allocation8 + $0x4a0] sm:$0xff]
    %v869 = vld [vmem:[#allocation8 + $0x4a8] sm:$0xff]
    %v870 = vld [vmem:[#allocation8 + $0x4b0] sm:$0xff]
    %v871 = vld [vmem:[#allocation8 + $0x4b8] sm:$0xff]
    %v872 = vld [vmem:[#allocation8 + $0x4c0] sm:$0xff]
    %v873 = vld [vmem:[#allocation8 + $0x4c8] sm:$0xff]
    %v874 = vld [vmem:[#allocation8 + $0x4d0] sm:$0xff]
    %v875 = vld [vmem:[#allocation8 + $0x4d8] sm:$0xff]
    %v876 = vld [vmem:[#allocation8 + $0x4e0] sm:$0xff]
    %v877 = vld [vmem:[#allocation8 + $0x4e8] sm:$0xff]
    %v878 = vld [vmem:[#allocation8 + $0x4f0] sm:$0xff]
    %v879 = vld [vmem:[#allocation8 + $0x4f8] sm:$0xff]
    %v880 = vld [vmem:[#allocation8 + $0x500] sm:$0xff]
    %v881 = vld [vmem:[#allocation8 + $0x508] sm:$0xff]
    %v882 = vld [vmem:[#allocation8 + $0x510] sm:$0xff]
    %v883 = vld [vmem:[#allocation8 + $0x518] sm:$0xff]
    %v884 = vld [vmem:[#allocation8 + $0x520] sm:$0xff]
    %v885 = vld [vmem:[#allocation8 + $0x528] sm:$0xff]
    %v886 = vld [vmem:[#allocation8 + $0x530] sm:$0xff]
    %v887 = vld [vmem:[#allocation8 + $0x538] sm:$0xff]
    %v888 = vld [vmem:[#allocation8 + $0x540] sm:$0xff]
    %v889 = vld [vmem:[#allocation8 + $0x548] sm:$0xff]
    %v890 = vld [vmem:[#allocation8 + $0x550] sm:$0xff]
    %v891 = vld [vmem:[#allocation8 + $0x558] sm:$0xff]
    %v892 = vld [vmem:[#allocation8 + $0x560] sm:$0xff]
    %v893 = vld [vmem:[#allocation8 + $0x568] sm:$0xff]
    %v894 = vld [vmem:[#allocation8 + $0x570] sm:$0xff]
    %v895 = vld [vmem:[#allocation8 + $0x578] sm:$0xff]
    %v896 = vld [vmem:[#allocation8 + $0x580] sm:$0xff]
    %v897 = vld [vmem:[#allocation8 + $0x588] sm:$0xff]
    %v898 = vld [vmem:[#allocation8 + $0x590] sm:$0xff]
    %v899 = vld [vmem:[#allocation8 + $0x598] sm:$0xff]
    %v900 = vld [vmem:[#allocation8 + $0x5a0] sm:$0xff]
    %v901 = vld [vmem:[#allocation8 + $0x5a8] sm:$0xff]
    %v902 = vld [vmem:[#allocation8 + $0x5b0] sm:$0xff]
    %v903 = vld [vmem:[#allocation8 + $0x5b8] sm:$0xff]
    %v904 = vld [vmem:[#allocation8 + $0x5c0] sm:$0xff]
    %v905 = vld [vmem:[#allocation8 + $0x5c8] sm:$0xff]
    %v906 = vld [vmem:[#allocation8 + $0x5d0] sm:$0xff]
    %v907 = vld [vmem:[#allocation8 + $0x5d8] sm:$0xff]
    %v908 = vld [vmem:[#allocation8 + $0x5e0] sm:$0xff]
    %v909 = vld [vmem:[#allocation8 + $0x5e8] sm:$0xff]
    %v910 = vld [vmem:[#allocation8 + $0x5f0] sm:$0xff]
    %v911 = vld [vmem:[#allocation8 + $0x5f8] sm:$0xff]
    %v912 = vld [vmem:[#allocation8 + $0x600] sm:$0xff]
    %v913 = vld [vmem:[#allocation8 + $0x608] sm:$0xff]
    %v914 = vld [vmem:[#allocation8 + $0x610] sm:$0xff]
    %v915 = vld [vmem:[#allocation8 + $0x618] sm:$0xff]
    %v916 = vld [vmem:[#allocation8 + $0x620] sm:$0xff]
    %v917 = vld [vmem:[#allocation8 + $0x628] sm:$0xff]
    %v918 = vld [vmem:[#allocation8 + $0x630] sm:$0xff]
    %v919 = vld [vmem:[#allocation8 + $0x638] sm:$0xff]
    %v920 = vld [vmem:[#allocation8 + $0x640] sm:$0xff]
    %v921 = vld [vmem:[#allocation8 + $0x648] sm:$0xff]
    %v922 = vld [vmem:[#allocation8 + $0x650] sm:$0xff]
    %v923 = vld [vmem:[#allocation8 + $0x658] sm:$0xff]
    %v924 = vld [vmem:[#allocation8 + $0x660] sm:$0xff]
    %v925 = vld [vmem:[#allocation8 + $0x668] sm:$0xff]
    %v926 = vld [vmem:[#allocation8 + $0x670] sm:$0xff]
    %v927 = vld [vmem:[#allocation8 + $0x678] sm:$0xff]
    %v928 = vld [vmem:[#allocation8 + $0x680] sm:$0xff]
    %v929 = vld [vmem:[#allocation8 + $0x688] sm:$0xff]
    %v930 = vld [vmem:[#allocation8 + $0x690] sm:$0xff]
    %v931 = vld [vmem:[#allocation8 + $0x698] sm:$0xff]
    %v932 = vld [vmem:[#allocation8 + $0x6a0] sm:$0xff]
    %v933 = vld [vmem:[#allocation8 + $0x6a8] sm:$0xff]
    %v934 = vld [vmem:[#allocation8 + $0x6b0] sm:$0xff]
    %v935 = vld [vmem:[#allocation8 + $0x6b8] sm:$0xff]
    %v936 = vld [vmem:[#allocation8 + $0x6c0] sm:$0xff]
    %v937 = vld [vmem:[#allocation8 + $0x6c8] sm:$0xff]
    %v938 = vld [vmem:[#allocation8 + $0x6d0] sm:$0xff]
    %v939 = vld [vmem:[#allocation8 + $0x6d8] sm:$0xff]
    %v940 = vld [vmem:[#allocation8 + $0x6e0] sm:$0xff]
    %v941 = vld [vmem:[#allocation8 + $0x6e8] sm:$0xff]
    %v942 = vld [vmem:[#allocation8 + $0x6f0] sm:$0xff]
    %v943 = vld [vmem:[#allocation8 + $0x6f8] sm:$0xff]
    %v944 = vld [vmem:[#allocation8 + $0x700] sm:$0xff]
    %v945 = vld [vmem:[#allocation8 + $0x708] sm:$0xff]
    %v946 = vld [vmem:[#allocation8 + $0x710] sm:$0xff]
    %v947 = vld [vmem:[#allocation8 + $0x718] sm:$0xff]
    %v948 = vld [vmem:[#allocation8 + $0x720] sm:$0xff]
    %v949 = vld [vmem:[#allocation8 + $0x728] sm:$0xff]
    %v950 = vld [vmem:[#allocation8 + $0x730] sm:$0xff]
    %v951 = vld [vmem:[#allocation8 + $0x738] sm:$0xff]
    %v952 = vld [vmem:[#allocation8 + $0x740] sm:$0xff]
    %v953 = vld [vmem:[#allocation8 + $0x748] sm:$0xff]
    %v954 = vld [vmem:[#allocation8 + $0x750] sm:$0xff]
    %v955 = vld [vmem:[#allocation8 + $0x758] sm:$0xff]
    %v956 = vld [vmem:[#allocation8 + $0x760] sm:$0xff]
    %v957 = vld [vmem:[#allocation8 + $0x768] sm:$0xff]
    %v958 = vld [vmem:[#allocation8 + $0x770] sm:$0xff]
    %v959 = vld [vmem:[#allocation8 + $0x778] sm:$0xff]
    %v960 = vld [vmem:[#allocation8 + $0x780] sm:$0xff]
    %v961 = vld [vmem:[#allocation8 + $0x788] sm:$0xff]
    %v962 = vld [vmem:[#allocation8 + $0x790] sm:$0xff]
    %v963 = vld [vmem:[#allocation8 + $0x798] sm:$0xff]
    %v964 = vld [vmem:[#allocation8 + $0x7a0] sm:$0xff]
    %v965 = vld [vmem:[#allocation8 + $0x7a8] sm:$0xff]
    %v966 = vld [vmem:[#allocation8 + $0x7b0] sm:$0xff]
    %v967 = vld [vmem:[#allocation8 + $0x7b8] sm:$0xff]
    %v968 = vld [vmem:[#allocation8 + $0x7c0] sm:$0xff]
    %v969 = vld [vmem:[#allocation8 + $0x7c8] sm:$0xff]
    %v970 = vld [vmem:[#allocation8 + $0x7d0] sm:$0xff]
    %v971 = vld [vmem:[#allocation8 + $0x7d8] sm:$0xff]
    %v972 = vld [vmem:[#allocation8 + $0x7e0] sm:$0xff]
    %v973 = vld [vmem:[#allocation8 + $0x7e8] sm:$0xff]
    %v974 = vld [vmem:[#allocation8 + $0x7f0] sm:$0xff]
    %v975 = vld [vmem:[#allocation8 + $0x7f8] sm:$0xff]
    %v976 = vld [vmem:[%s4] sm:$0xf]
    %v978 = vlaneseq
    %v979 = vshrl.u32 %v978, 7
    %v980 = vsub.s32 0, %v979
    %v981 = vrot.slane %v976, %v980
    %v982 = vlaneseq
    %v983 = vshrl.u32 %v982, 7
    %v984 = vsub.s32 1, %v983
    %v985 = vrot.slane %v976, %v984
    %v986 = vlaneseq
    %v987 = vshrl.u32 %v986, 7
    %v988 = vsub.s32 2, %v987
    %v989 = vrot.slane %v976, %v988
    %v990 = vlaneseq
    %v991 = vshrl.u32 %v990, 7
    %v992 = vsub.s32 3, %v991
    %v993 = vrot.slane %v976, %v992
    %v1254 = vunpack.c.l.b16 %v720
    %v1255 = vunpack.c.h.b16 %v720
    %v1256 = vunpack.c.l.b16 %v721
    %v1257 = vunpack.c.h.b16 %v721
    %v1258 = vunpack.c.l.b16 %v722
    %v1259 = vunpack.c.h.b16 %v722
    %v1260 = vunpack.c.l.b16 %v723
    %v1261 = vunpack.c.h.b16 %v723
    %v1262 = vunpack.c.l.b16 %v724
    %v1263 = vunpack.c.h.b16 %v724
    %v1264 = vunpack.c.l.b16 %v725
    %v1265 = vunpack.c.h.b16 %v725
    %v1266 = vunpack.c.l.b16 %v726
    %v1267 = vunpack.c.h.b16 %v726
    %v1268 = vunpack.c.l.b16 %v727
    %v1269 = vunpack.c.h.b16 %v727
    %v1270 = vunpack.c.l.b16 %v728
    %v1271 = vunpack.c.h.b16 %v728
    %v1272 = vunpack.c.l.b16 %v729
    %v1273 = vunpack.c.h.b16 %v729
    %v1274 = vunpack.c.l.b16 %v730
    %v1275 = vunpack.c.h.b16 %v730
    %v1276 = vunpack.c.l.b16 %v731
    %v1277 = vunpack.c.h.b16 %v731
    %v1278 = vunpack.c.l.b16 %v732
    %v1279 = vunpack.c.h.b16 %v732
    %v1280 = vunpack.c.l.b16 %v733
    %v1281 = vunpack.c.h.b16 %v733
    %v1282 = vunpack.c.l.b16 %v734
    %v1283 = vunpack.c.h.b16 %v734
    %v1284 = vunpack.c.l.b16 %v735
    %v1285 = vunpack.c.h.b16 %v735
    %v1286 = vunpack.c.l.b16 %v736
    %v1287 = vunpack.c.h.b16 %v736
    %v1288 = vunpack.c.l.b16 %v737
    %v1289 = vunpack.c.h.b16 %v737
    %v1290 = vunpack.c.l.b16 %v738
    %v1291 = vunpack.c.h.b16 %v738
    %v1292 = vunpack.c.l.b16 %v739
    %v1293 = vunpack.c.h.b16 %v739
    %v1294 = vunpack.c.l.b16 %v740
    %v1295 = vunpack.c.h.b16 %v740
    %v1296 = vunpack.c.l.b16 %v741
    %v1297 = vunpack.c.h.b16 %v741
    %v1298 = vunpack.c.l.b16 %v742
    %v1299 = vunpack.c.h.b16 %v742
    %v1300 = vunpack.c.l.b16 %v743
    %v1301 = vunpack.c.h.b16 %v743
    %v1302 = vunpack.c.l.b16 %v744
    %v1303 = vunpack.c.h.b16 %v744
    %v1304 = vunpack.c.l.b16 %v745
    %v1305 = vunpack.c.h.b16 %v745
    %v1306 = vunpack.c.l.b16 %v746
    %v1307 = vunpack.c.h.b16 %v746
    %v1308 = vunpack.c.l.b16 %v747
    %v1309 = vunpack.c.h.b16 %v747
    %v1310 = vunpack.c.l.b16 %v748
    %v1311 = vunpack.c.h.b16 %v748
    %v1312 = vunpack.c.l.b16 %v749
    %v1313 = vunpack.c.h.b16 %v749
    %v1314 = vunpack.c.l.b16 %v750
    %v1315 = vunpack.c.h.b16 %v750
    %v1316 = vunpack.c.l.b16 %v751
    %v1317 = vunpack.c.h.b16 %v751
    %v1318 = vunpack.c.l.b16 %v752
    %v1319 = vunpack.c.h.b16 %v752
    %v1320 = vunpack.c.l.b16 %v753
    %v1321 = vunpack.c.h.b16 %v753
    %v1322 = vunpack.c.l.b16 %v754
    %v1323 = vunpack.c.h.b16 %v754
    %v1324 = vunpack.c.l.b16 %v755
    %v1325 = vunpack.c.h.b16 %v755
    %v1326 = vunpack.c.l.b16 %v756
    %v1327 = vunpack.c.h.b16 %v756
    %v1328 = vunpack.c.l.b16 %v757
    %v1329 = vunpack.c.h.b16 %v757
    %v1330 = vunpack.c.l.b16 %v758
    %v1331 = vunpack.c.h.b16 %v758
    %v1332 = vunpack.c.l.b16 %v759
    %v1333 = vunpack.c.h.b16 %v759
    %v1334 = vunpack.c.l.b16 %v760
    %v1335 = vunpack.c.h.b16 %v760
    %v1336 = vunpack.c.l.b16 %v761
    %v1337 = vunpack.c.h.b16 %v761
    %v1338 = vunpack.c.l.b16 %v762
    %v1339 = vunpack.c.h.b16 %v762
    %v1340 = vunpack.c.l.b16 %v763
    %v1341 = vunpack.c.h.b16 %v763
    %v1342 = vunpack.c.l.b16 %v764
    %v1343 = vunpack.c.h.b16 %v764
    %v1344 = vunpack.c.l.b16 %v765
    %v1345 = vunpack.c.h.b16 %v765
    %v1346 = vunpack.c.l.b16 %v766
    %v1347 = vunpack.c.h.b16 %v766
    %v1348 = vunpack.c.l.b16 %v767
    %v1349 = vunpack.c.h.b16 %v767
    %v1350 = vunpack.c.l.b16 %v768
    %v1351 = vunpack.c.h.b16 %v768
    %v1352 = vunpack.c.l.b16 %v769
    %v1353 = vunpack.c.h.b16 %v769
    %v1354 = vunpack.c.l.b16 %v770
    %v1355 = vunpack.c.h.b16 %v770
    %v1356 = vunpack.c.l.b16 %v771
    %v1357 = vunpack.c.h.b16 %v771
    %v1358 = vunpack.c.l.b16 %v772
    %v1359 = vunpack.c.h.b16 %v772
    %v1360 = vunpack.c.l.b16 %v773
    %v1361 = vunpack.c.h.b16 %v773
    %v1362 = vunpack.c.l.b16 %v774
    %v1363 = vunpack.c.h.b16 %v774
    %v1364 = vunpack.c.l.b16 %v775
    %v1365 = vunpack.c.h.b16 %v775
    %v1366 = vunpack.c.l.b16 %v776
    %v1367 = vunpack.c.h.b16 %v776
    %v1368 = vunpack.c.l.b16 %v777
    %v1369 = vunpack.c.h.b16 %v777
    %v1370 = vunpack.c.l.b16 %v778
    %v1371 = vunpack.c.h.b16 %v778
    %v1372 = vunpack.c.l.b16 %v779
    %v1373 = vunpack.c.h.b16 %v779
    %v1374 = vunpack.c.l.b16 %v780
    %v1375 = vunpack.c.h.b16 %v780
    %v1376 = vunpack.c.l.b16 %v781
    %v1377 = vunpack.c.h.b16 %v781
    %v1378 = vunpack.c.l.b16 %v782
    %v1379 = vunpack.c.h.b16 %v782
    %v1380 = vunpack.c.l.b16 %v783
    %v1381 = vunpack.c.h.b16 %v783
    %v1382 = vunpack.c.l.b16 %v784
    %v1383 = vunpack.c.h.b16 %v784
    %v1384 = vunpack.c.l.b16 %v785
    %v1385 = vunpack.c.h.b16 %v785
    %v1386 = vunpack.c.l.b16 %v786
    %v1387 = vunpack.c.h.b16 %v786
    %v1388 = vunpack.c.l.b16 %v787
    %v1389 = vunpack.c.h.b16 %v787
    %v1390 = vunpack.c.l.b16 %v788
    %v1391 = vunpack.c.h.b16 %v788
    %v1392 = vunpack.c.l.b16 %v789
    %v1393 = vunpack.c.h.b16 %v789
    %v1394 = vunpack.c.l.b16 %v790
    %v1395 = vunpack.c.h.b16 %v790
    %v1396 = vunpack.c.l.b16 %v791
    %v1397 = vunpack.c.h.b16 %v791
    %v1398 = vunpack.c.l.b16 %v792
    %v1399 = vunpack.c.h.b16 %v792
    %v1400 = vunpack.c.l.b16 %v793
    %v1401 = vunpack.c.h.b16 %v793
    %v1402 = vunpack.c.l.b16 %v794
    %v1403 = vunpack.c.h.b16 %v794
    %v1404 = vunpack.c.l.b16 %v795
    %v1405 = vunpack.c.h.b16 %v795
    %v1406 = vunpack.c.l.b16 %v796
    %v1407 = vunpack.c.h.b16 %v796
    %v1408 = vunpack.c.l.b16 %v797
    %v1409 = vunpack.c.h.b16 %v797
    %v1410 = vunpack.c.l.b16 %v798
    %v1411 = vunpack.c.h.b16 %v798
    %v1412 = vunpack.c.l.b16 %v799
    %v1413 = vunpack.c.h.b16 %v799
    %v1414 = vunpack.c.l.b16 %v800
    %v1415 = vunpack.c.h.b16 %v800
    %v1416 = vunpack.c.l.b16 %v801
    %v1417 = vunpack.c.h.b16 %v801
    %v1418 = vunpack.c.l.b16 %v802
    %v1419 = vunpack.c.h.b16 %v802
    %v1420 = vunpack.c.l.b16 %v803
    %v1421 = vunpack.c.h.b16 %v803
    %v1422 = vunpack.c.l.b16 %v804
    %v1423 = vunpack.c.h.b16 %v804
    %v1424 = vunpack.c.l.b16 %v805
    %v1425 = vunpack.c.h.b16 %v805
    %v1426 = vunpack.c.l.b16 %v806
    %v1427 = vunpack.c.h.b16 %v806
    %v1428 = vunpack.c.l.b16 %v807
    %v1429 = vunpack.c.h.b16 %v807
    %v1430 = vunpack.c.l.b16 %v808
    %v1431 = vunpack.c.h.b16 %v808
    %v1432 = vunpack.c.l.b16 %v809
    %v1433 = vunpack.c.h.b16 %v809
    %v1434 = vunpack.c.l.b16 %v810
    %v1435 = vunpack.c.h.b16 %v810
    %v1436 = vunpack.c.l.b16 %v811
    %v1437 = vunpack.c.h.b16 %v811
    %v1438 = vunpack.c.l.b16 %v812
    %v1439 = vunpack.c.h.b16 %v812
    %v1440 = vunpack.c.l.b16 %v813
    %v1441 = vunpack.c.h.b16 %v813
    %v1442 = vunpack.c.l.b16 %v814
    %v1443 = vunpack.c.h.b16 %v814
    %v1444 = vunpack.c.l.b16 %v815
    %v1445 = vunpack.c.h.b16 %v815
    %v1446 = vunpack.c.l.b16 %v816
    %v1447 = vunpack.c.h.b16 %v816
    %v1448 = vunpack.c.l.b16 %v817
    %v1449 = vunpack.c.h.b16 %v817
    %v1450 = vunpack.c.l.b16 %v818
    %v1451 = vunpack.c.h.b16 %v818
    %v1452 = vunpack.c.l.b16 %v819
    %v1453 = vunpack.c.h.b16 %v819
    %v1454 = vunpack.c.l.b16 %v820
    %v1455 = vunpack.c.h.b16 %v820
    %v1456 = vunpack.c.l.b16 %v821
    %v1457 = vunpack.c.h.b16 %v821
    %v1458 = vunpack.c.l.b16 %v822
    %v1459 = vunpack.c.h.b16 %v822
    %v1460 = vunpack.c.l.b16 %v823
    %v1461 = vunpack.c.h.b16 %v823
    %v1462 = vunpack.c.l.b16 %v824
    %v1463 = vunpack.c.h.b16 %v824
    %v1464 = vunpack.c.l.b16 %v825
    %v1465 = vunpack.c.h.b16 %v825
    %v1466 = vunpack.c.l.b16 %v826
    %v1467 = vunpack.c.h.b16 %v826
    %v1468 = vunpack.c.l.b16 %v827
    %v1469 = vunpack.c.h.b16 %v827
    %v1470 = vunpack.c.l.b16 %v828
    %v1471 = vunpack.c.h.b16 %v828
    %v1472 = vunpack.c.l.b16 %v829
    %v1473 = vunpack.c.h.b16 %v829
    %v1474 = vunpack.c.l.b16 %v830
    %v1475 = vunpack.c.h.b16 %v830
    %v1476 = vunpack.c.l.b16 %v831
    %v1477 = vunpack.c.h.b16 %v831
    %v1478 = vunpack.c.l.b16 %v832
    %v1479 = vunpack.c.h.b16 %v832
    %v1480 = vunpack.c.l.b16 %v833
    %v1481 = vunpack.c.h.b16 %v833
    %v1482 = vunpack.c.l.b16 %v834
    %v1483 = vunpack.c.h.b16 %v834
    %v1484 = vunpack.c.l.b16 %v835
    %v1485 = vunpack.c.h.b16 %v835
    %v1486 = vunpack.c.l.b16 %v836
    %v1487 = vunpack.c.h.b16 %v836
    %v1488 = vunpack.c.l.b16 %v837
    %v1489 = vunpack.c.h.b16 %v837
    %v1490 = vunpack.c.l.b16 %v838
    %v1491 = vunpack.c.h.b16 %v838
    %v1492 = vunpack.c.l.b16 %v839
    %v1493 = vunpack.c.h.b16 %v839
    %v1494 = vunpack.c.l.b16 %v840
    %v1495 = vunpack.c.h.b16 %v840
    %v1496 = vunpack.c.l.b16 %v841
    %v1497 = vunpack.c.h.b16 %v841
    %v1498 = vunpack.c.l.b16 %v842
    %v1499 = vunpack.c.h.b16 %v842
    %v1500 = vunpack.c.l.b16 %v843
    %v1501 = vunpack.c.h.b16 %v843
    %v1502 = vunpack.c.l.b16 %v844
    %v1503 = vunpack.c.h.b16 %v844
    %v1504 = vunpack.c.l.b16 %v845
    %v1505 = vunpack.c.h.b16 %v845
    %v1506 = vunpack.c.l.b16 %v846
    %v1507 = vunpack.c.h.b16 %v846
    %v1508 = vunpack.c.l.b16 %v847
    %v1509 = vunpack.c.h.b16 %v847
    %v1510 = vunpack.c.l.b16 %v848
    %v1511 = vunpack.c.h.b16 %v848
    %v1512 = vunpack.c.l.b16 %v849
    %v1513 = vunpack.c.h.b16 %v849
    %v1514 = vunpack.c.l.b16 %v850
    %v1515 = vunpack.c.h.b16 %v850
    %v1516 = vunpack.c.l.b16 %v851
    %v1517 = vunpack.c.h.b16 %v851
    %v1518 = vunpack.c.l.b16 %v852
    %v1519 = vunpack.c.h.b16 %v852
    %v1520 = vunpack.c.l.b16 %v853
    %v1521 = vunpack.c.h.b16 %v853
    %v1522 = vunpack.c.l.b16 %v854
    %v1523 = vunpack.c.h.b16 %v854
    %v1524 = vunpack.c.l.b16 %v855
    %v1525 = vunpack.c.h.b16 %v855
    %v1526 = vunpack.c.l.b16 %v856
    %v1527 = vunpack.c.h.b16 %v856
    %v1528 = vunpack.c.l.b16 %v857
    %v1529 = vunpack.c.h.b16 %v857
    %v1530 = vunpack.c.l.b16 %v858
    %v1531 = vunpack.c.h.b16 %v858
    %v1532 = vunpack.c.l.b16 %v859
    %v1533 = vunpack.c.h.b16 %v859
    %v1534 = vunpack.c.l.b16 %v860
    %v1535 = vunpack.c.h.b16 %v860
    %v1536 = vunpack.c.l.b16 %v861
    %v1537 = vunpack.c.h.b16 %v861
    %v1538 = vunpack.c.l.b16 %v862
    %v1539 = vunpack.c.h.b16 %v862
    %v1540 = vunpack.c.l.b16 %v863
    %v1541 = vunpack.c.h.b16 %v863
    %v1542 = vunpack.c.l.b16 %v864
    %v1543 = vunpack.c.h.b16 %v864
    %v1544 = vunpack.c.l.b16 %v865
    %v1545 = vunpack.c.h.b16 %v865
    %v1546 = vunpack.c.l.b16 %v866
    %v1547 = vunpack.c.h.b16 %v866
    %v1548 = vunpack.c.l.b16 %v867
    %v1549 = vunpack.c.h.b16 %v867
    %v1550 = vunpack.c.l.b16 %v868
    %v1551 = vunpack.c.h.b16 %v868
    %v1552 = vunpack.c.l.b16 %v869
    %v1553 = vunpack.c.h.b16 %v869
    %v1554 = vunpack.c.l.b16 %v870
    %v1555 = vunpack.c.h.b16 %v870
    %v1556 = vunpack.c.l.b16 %v871
    %v1557 = vunpack.c.h.b16 %v871
    %v1558 = vunpack.c.l.b16 %v872
    %v1559 = vunpack.c.h.b16 %v872
    %v1560 = vunpack.c.l.b16 %v873
    %v1561 = vunpack.c.h.b16 %v873
    %v1562 = vunpack.c.l.b16 %v874
    %v1563 = vunpack.c.h.b16 %v874
    %v1564 = vunpack.c.l.b16 %v875
    %v1565 = vunpack.c.h.b16 %v875
    %v1566 = vunpack.c.l.b16 %v876
    %v1567 = vunpack.c.h.b16 %v876
    %v1568 = vunpack.c.l.b16 %v877
    %v1569 = vunpack.c.h.b16 %v877
    %v1570 = vunpack.c.l.b16 %v878
    %v1571 = vunpack.c.h.b16 %v878
    %v1572 = vunpack.c.l.b16 %v879
    %v1573 = vunpack.c.h.b16 %v879
    %v1574 = vunpack.c.l.b16 %v880
    %v1575 = vunpack.c.h.b16 %v880
    %v1576 = vunpack.c.l.b16 %v881
    %v1577 = vunpack.c.h.b16 %v881
    %v1578 = vunpack.c.l.b16 %v882
    %v1579 = vunpack.c.h.b16 %v882
    %v1580 = vunpack.c.l.b16 %v883
    %v1581 = vunpack.c.h.b16 %v883
    %v1582 = vunpack.c.l.b16 %v884
    %v1583 = vunpack.c.h.b16 %v884
    %v1584 = vunpack.c.l.b16 %v885
    %v1585 = vunpack.c.h.b16 %v885
    %v1586 = vunpack.c.l.b16 %v886
    %v1587 = vunpack.c.h.b16 %v886
    %v1588 = vunpack.c.l.b16 %v887
    %v1589 = vunpack.c.h.b16 %v887
    %v1590 = vunpack.c.l.b16 %v888
    %v1591 = vunpack.c.h.b16 %v888
    %v1592 = vunpack.c.l.b16 %v889
    %v1593 = vunpack.c.h.b16 %v889
    %v1594 = vunpack.c.l.b16 %v890
    %v1595 = vunpack.c.h.b16 %v890
    %v1596 = vunpack.c.l.b16 %v891
    %v1597 = vunpack.c.h.b16 %v891
    %v1598 = vunpack.c.l.b16 %v892
    %v1599 = vunpack.c.h.b16 %v892
    %v1600 = vunpack.c.l.b16 %v893
    %v1601 = vunpack.c.h.b16 %v893
    %v1602 = vunpack.c.l.b16 %v894
    %v1603 = vunpack.c.h.b16 %v894
    %v1604 = vunpack.c.l.b16 %v895
    %v1605 = vunpack.c.h.b16 %v895
    %v1606 = vunpack.c.l.b16 %v896
    %v1607 = vunpack.c.h.b16 %v896
    %v1608 = vunpack.c.l.b16 %v897
    %v1609 = vunpack.c.h.b16 %v897
    %v1610 = vunpack.c.l.b16 %v898
    %v1611 = vunpack.c.h.b16 %v898
    %v1612 = vunpack.c.l.b16 %v899
    %v1613 = vunpack.c.h.b16 %v899
    %v1614 = vunpack.c.l.b16 %v900
    %v1615 = vunpack.c.h.b16 %v900
    %v1616 = vunpack.c.l.b16 %v901
    %v1617 = vunpack.c.h.b16 %v901
    %v1618 = vunpack.c.l.b16 %v902
    %v1619 = vunpack.c.h.b16 %v902
    %v1620 = vunpack.c.l.b16 %v903
    %v1621 = vunpack.c.h.b16 %v903
    %v1622 = vunpack.c.l.b16 %v904
    %v1623 = vunpack.c.h.b16 %v904
    %v1624 = vunpack.c.l.b16 %v905
    %v1625 = vunpack.c.h.b16 %v905
    %v1626 = vunpack.c.l.b16 %v906
    %v1627 = vunpack.c.h.b16 %v906
    %v1628 = vunpack.c.l.b16 %v907
    %v1629 = vunpack.c.h.b16 %v907
    %v1630 = vunpack.c.l.b16 %v908
    %v1631 = vunpack.c.h.b16 %v908
    %v1632 = vunpack.c.l.b16 %v909
    %v1633 = vunpack.c.h.b16 %v909
    %v1634 = vunpack.c.l.b16 %v910
    %v1635 = vunpack.c.h.b16 %v910
    %v1636 = vunpack.c.l.b16 %v911
    %v1637 = vunpack.c.h.b16 %v911
    %v1638 = vunpack.c.l.b16 %v912
    %v1639 = vunpack.c.h.b16 %v912
    %v1640 = vunpack.c.l.b16 %v913
    %v1641 = vunpack.c.h.b16 %v913
    %v1642 = vunpack.c.l.b16 %v914
    %v1643 = vunpack.c.h.b16 %v914
    %v1644 = vunpack.c.l.b16 %v915
    %v1645 = vunpack.c.h.b16 %v915
    %v1646 = vunpack.c.l.b16 %v916
    %v1647 = vunpack.c.h.b16 %v916
    %v1648 = vunpack.c.l.b16 %v917
    %v1649 = vunpack.c.h.b16 %v917
    %v1650 = vunpack.c.l.b16 %v918
    %v1651 = vunpack.c.h.b16 %v918
    %v1652 = vunpack.c.l.b16 %v919
    %v1653 = vunpack.c.h.b16 %v919
    %v1654 = vunpack.c.l.b16 %v920
    %v1655 = vunpack.c.h.b16 %v920
    %v1656 = vunpack.c.l.b16 %v921
    %v1657 = vunpack.c.h.b16 %v921
    %v1658 = vunpack.c.l.b16 %v922
    %v1659 = vunpack.c.h.b16 %v922
    %v1660 = vunpack.c.l.b16 %v923
    %v1661 = vunpack.c.h.b16 %v923
    %v1662 = vunpack.c.l.b16 %v924
    %v1663 = vunpack.c.h.b16 %v924
    %v1664 = vunpack.c.l.b16 %v925
    %v1665 = vunpack.c.h.b16 %v925
    %v1666 = vunpack.c.l.b16 %v926
    %v1667 = vunpack.c.h.b16 %v926
    %v1668 = vunpack.c.l.b16 %v927
    %v1669 = vunpack.c.h.b16 %v927
    %v1670 = vunpack.c.l.b16 %v928
    %v1671 = vunpack.c.h.b16 %v928
    %v1672 = vunpack.c.l.b16 %v929
    %v1673 = vunpack.c.h.b16 %v929
    %v1674 = vunpack.c.l.b16 %v930
    %v1675 = vunpack.c.h.b16 %v930
    %v1676 = vunpack.c.l.b16 %v931
    %v1677 = vunpack.c.h.b16 %v931
    %v1678 = vunpack.c.l.b16 %v932
    %v1679 = vunpack.c.h.b16 %v932
    %v1680 = vunpack.c.l.b16 %v933
    %v1681 = vunpack.c.h.b16 %v933
    %v1682 = vunpack.c.l.b16 %v934
    %v1683 = vunpack.c.h.b16 %v934
    %v1684 = vunpack.c.l.b16 %v935
    %v1685 = vunpack.c.h.b16 %v935
    %v1686 = vunpack.c.l.b16 %v936
    %v1687 = vunpack.c.h.b16 %v936
    %v1688 = vunpack.c.l.b16 %v937
    %v1689 = vunpack.c.h.b16 %v937
    %v1690 = vunpack.c.l.b16 %v938
    %v1691 = vunpack.c.h.b16 %v938
    %v1692 = vunpack.c.l.b16 %v939
    %v1693 = vunpack.c.h.b16 %v939
    %v1694 = vunpack.c.l.b16 %v940
    %v1695 = vunpack.c.h.b16 %v940
    %v1696 = vunpack.c.l.b16 %v941
    %v1697 = vunpack.c.h.b16 %v941
    %v1698 = vunpack.c.l.b16 %v942
    %v1699 = vunpack.c.h.b16 %v942
    %v1700 = vunpack.c.l.b16 %v943
    %v1701 = vunpack.c.h.b16 %v943
    %v1702 = vunpack.c.l.b16 %v944
    %v1703 = vunpack.c.h.b16 %v944
    %v1704 = vunpack.c.l.b16 %v945
    %v1705 = vunpack.c.h.b16 %v945
    %v1706 = vunpack.c.l.b16 %v946
    %v1707 = vunpack.c.h.b16 %v946
    %v1708 = vunpack.c.l.b16 %v947
    %v1709 = vunpack.c.h.b16 %v947
    %v1710 = vunpack.c.l.b16 %v948
    %v1711 = vunpack.c.h.b16 %v948
    %v1712 = vunpack.c.l.b16 %v949
    %v1713 = vunpack.c.h.b16 %v949
    %v1714 = vunpack.c.l.b16 %v950
    %v1715 = vunpack.c.h.b16 %v950
    %v1716 = vunpack.c.l.b16 %v951
    %v1717 = vunpack.c.h.b16 %v951
    %v1718 = vunpack.c.l.b16 %v952
    %v1719 = vunpack.c.h.b16 %v952
    %v1720 = vunpack.c.l.b16 %v953
    %v1721 = vunpack.c.h.b16 %v953
    %v1722 = vunpack.c.l.b16 %v954
    %v1723 = vunpack.c.h.b16 %v954
    %v1724 = vunpack.c.l.b16 %v955
    %v1725 = vunpack.c.h.b16 %v955
    %v1726 = vunpack.c.l.b16 %v956
    %v1727 = vunpack.c.h.b16 %v956
    %v1728 = vunpack.c.l.b16 %v957
    %v1729 = vunpack.c.h.b16 %v957
    %v1730 = vunpack.c.l.b16 %v958
    %v1731 = vunpack.c.h.b16 %v958
    %v1732 = vunpack.c.l.b16 %v959
    %v1733 = vunpack.c.h.b16 %v959
    %v1734 = vunpack.c.l.b16 %v960
    %v1735 = vunpack.c.h.b16 %v960
    %v1736 = vunpack.c.l.b16 %v961
    %v1737 = vunpack.c.h.b16 %v961
    %v1738 = vunpack.c.l.b16 %v962
    %v1739 = vunpack.c.h.b16 %v962
    %v1740 = vunpack.c.l.b16 %v963
    %v1741 = vunpack.c.h.b16 %v963
    %v1742 = vunpack.c.l.b16 %v964
    %v1743 = vunpack.c.h.b16 %v964
    %v1744 = vunpack.c.l.b16 %v965
    %v1745 = vunpack.c.h.b16 %v965
    %v1746 = vunpack.c.l.b16 %v966
    %v1747 = vunpack.c.h.b16 %v966
    %v1748 = vunpack.c.l.b16 %v967
    %v1749 = vunpack.c.h.b16 %v967
    %v1750 = vunpack.c.l.b16 %v968
    %v1751 = vunpack.c.h.b16 %v968
    %v1752 = vunpack.c.l.b16 %v969
    %v1753 = vunpack.c.h.b16 %v969
    %v1754 = vunpack.c.l.b16 %v970
    %v1755 = vunpack.c.h.b16 %v970
    %v1756 = vunpack.c.l.b16 %v971
    %v1757 = vunpack.c.h.b16 %v971
    %v1758 = vunpack.c.l.b16 %v972
    %v1759 = vunpack.c.h.b16 %v972
    %v1760 = vunpack.c.l.b16 %v973
    %v1761 = vunpack.c.h.b16 %v973
    %v1762 = vunpack.c.l.b16 %v974
    %v1763 = vunpack.c.h.b16 %v974
    %v1764 = vunpack.c.l.b16 %v975
    %v1765 = vunpack.c.h.b16 %v975
    %v1766 = vpack.c.b16 %v1258, %v1254
    %v1767 = vpack.c.b16 %v1259, %v1255
    %v1768 = vpack.c.b16 %v1260, %v1256
    %v1769 = vpack.c.b16 %v1261, %v1257
    %v1770 = vpack.c.b16 %v1266, %v1262
    %v1771 = vpack.c.b16 %v1267, %v1263
    %v1772 = vpack.c.b16 %v1268, %v1264
    %v1773 = vpack.c.b16 %v1269, %v1265
    %v1774 = vpack.c.b16 %v1274, %v1270
    %v1775 = vpack.c.b16 %v1275, %v1271
    %v1776 = vpack.c.b16 %v1276, %v1272
    %v1777 = vpack.c.b16 %v1277, %v1273
    %v1778 = vpack.c.b16 %v1282, %v1278
    %v1779 = vpack.c.b16 %v1283, %v1279
    %v1780 = vpack.c.b16 %v1284, %v1280
    %v1781 = vpack.c.b16 %v1285, %v1281
    %v1782 = vpack.c.b16 %v1290, %v1286
    %v1783 = vpack.c.b16 %v1291, %v1287
    %v1784 = vpack.c.b16 %v1292, %v1288
    %v1785 = vpack.c.b16 %v1293, %v1289
    %v1786 = vpack.c.b16 %v1298, %v1294
    %v1787 = vpack.c.b16 %v1299, %v1295
    %v1788 = vpack.c.b16 %v1300, %v1296
    %v1789 = vpack.c.b16 %v1301, %v1297
    %v1790 = vpack.c.b16 %v1306, %v1302
    %v1791 = vpack.c.b16 %v1307, %v1303
    %v1792 = vpack.c.b16 %v1308, %v1304
    %v1793 = vpack.c.b16 %v1309, %v1305
    %v1794 = vpack.c.b16 %v1314, %v1310
    %v1795 = vpack.c.b16 %v1315, %v1311
    %v1796 = vpack.c.b16 %v1316, %v1312
    %v1797 = vpack.c.b16 %v1317, %v1313
    %v1798 = vpack.c.b16 %v1322, %v1318
    %v1799 = vpack.c.b16 %v1323, %v1319
    %v1800 = vpack.c.b16 %v1324, %v1320
    %v1801 = vpack.c.b16 %v1325, %v1321
    %v1802 = vpack.c.b16 %v1330, %v1326
    %v1803 = vpack.c.b16 %v1331, %v1327
    %v1804 = vpack.c.b16 %v1332, %v1328
    %v1805 = vpack.c.b16 %v1333, %v1329
    %v1806 = vpack.c.b16 %v1338, %v1334
    %v1807 = vpack.c.b16 %v1339, %v1335
    %v1808 = vpack.c.b16 %v1340, %v1336
    %v1809 = vpack.c.b16 %v1341, %v1337
    %v1810 = vpack.c.b16 %v1346, %v1342
    %v1811 = vpack.c.b16 %v1347, %v1343
    %v1812 = vpack.c.b16 %v1348, %v1344
    %v1813 = vpack.c.b16 %v1349, %v1345
    %v1814 = vpack.c.b16 %v1354, %v1350
    %v1815 = vpack.c.b16 %v1355, %v1351
    %v1816 = vpack.c.b16 %v1356, %v1352
    %v1817 = vpack.c.b16 %v1357, %v1353
    %v1818 = vpack.c.b16 %v1362, %v1358
    %v1819 = vpack.c.b16 %v1363, %v1359
    %v1820 = vpack.c.b16 %v1364, %v1360
    %v1821 = vpack.c.b16 %v1365, %v1361
    %v1822 = vpack.c.b16 %v1370, %v1366
    %v1823 = vpack.c.b16 %v1371, %v1367
    %v1824 = vpack.c.b16 %v1372, %v1368
    %v1825 = vpack.c.b16 %v1373, %v1369
    %v1826 = vpack.c.b16 %v1378, %v1374
    %v1827 = vpack.c.b16 %v1379, %v1375
    %v1828 = vpack.c.b16 %v1380, %v1376
    %v1829 = vpack.c.b16 %v1381, %v1377
    %v1830 = vpack.c.b16 %v1386, %v1382
    %v1831 = vpack.c.b16 %v1387, %v1383
    %v1832 = vpack.c.b16 %v1388, %v1384
    %v1833 = vpack.c.b16 %v1389, %v1385
    %v1834 = vpack.c.b16 %v1394, %v1390
    %v1835 = vpack.c.b16 %v1395, %v1391
    %v1836 = vpack.c.b16 %v1396, %v1392
    %v1837 = vpack.c.b16 %v1397, %v1393
    %v1838 = vpack.c.b16 %v1402, %v1398
    %v1839 = vpack.c.b16 %v1403, %v1399
    %v1840 = vpack.c.b16 %v1404, %v1400
    %v1841 = vpack.c.b16 %v1405, %v1401
    %v1842 = vpack.c.b16 %v1410, %v1406
    %v1843 = vpack.c.b16 %v1411, %v1407
    %v1844 = vpack.c.b16 %v1412, %v1408
    %v1845 = vpack.c.b16 %v1413, %v1409
    %v1846 = vpack.c.b16 %v1418, %v1414
    %v1847 = vpack.c.b16 %v1419, %v1415
    %v1848 = vpack.c.b16 %v1420, %v1416
    %v1849 = vpack.c.b16 %v1421, %v1417
    %v1850 = vpack.c.b16 %v1426, %v1422
    %v1851 = vpack.c.b16 %v1427, %v1423
    %v1852 = vpack.c.b16 %v1428, %v1424
    %v1853 = vpack.c.b16 %v1429, %v1425
    %v1854 = vpack.c.b16 %v1434, %v1430
    %v1855 = vpack.c.b16 %v1435, %v1431
    %v1856 = vpack.c.b16 %v1436, %v1432
    %v1857 = vpack.c.b16 %v1437, %v1433
    %v1858 = vpack.c.b16 %v1442, %v1438
    %v1859 = vpack.c.b16 %v1443, %v1439
    %v1860 = vpack.c.b16 %v1444, %v1440
    %v1861 = vpack.c.b16 %v1445, %v1441
    %v1862 = vpack.c.b16 %v1450, %v1446
    %v1863 = vpack.c.b16 %v1451, %v1447
    %v1864 = vpack.c.b16 %v1452, %v1448
    %v1865 = vpack.c.b16 %v1453, %v1449
    %v1866 = vpack.c.b16 %v1458, %v1454
    %v1867 = vpack.c.b16 %v1459, %v1455
    %v1868 = vpack.c.b16 %v1460, %v1456
    %v1869 = vpack.c.b16 %v1461, %v1457
    %v1870 = vpack.c.b16 %v1466, %v1462
    %v1871 = vpack.c.b16 %v1467, %v1463
    %v1872 = vpack.c.b16 %v1468, %v1464
    %v1873 = vpack.c.b16 %v1469, %v1465
    %v1874 = vpack.c.b16 %v1474, %v1470
    %v1875 = vpack.c.b16 %v1475, %v1471
    %v1876 = vpack.c.b16 %v1476, %v1472
    %v1877 = vpack.c.b16 %v1477, %v1473
    %v1878 = vpack.c.b16 %v1482, %v1478
    %v1879 = vpack.c.b16 %v1483, %v1479
    %v1880 = vpack.c.b16 %v1484, %v1480
    %v1881 = vpack.c.b16 %v1485, %v1481
    %v1882 = vpack.c.b16 %v1490, %v1486
    %v1883 = vpack.c.b16 %v1491, %v1487
    %v1884 = vpack.c.b16 %v1492, %v1488
    %v1885 = vpack.c.b16 %v1493, %v1489
    %v1886 = vpack.c.b16 %v1498, %v1494
    %v1887 = vpack.c.b16 %v1499, %v1495
    %v1888 = vpack.c.b16 %v1500, %v1496
    %v1889 = vpack.c.b16 %v1501, %v1497
    %v1890 = vpack.c.b16 %v1506, %v1502
    %v1891 = vpack.c.b16 %v1507, %v1503
    %v1892 = vpack.c.b16 %v1508, %v1504
    %v1893 = vpack.c.b16 %v1509, %v1505
    %v1894 = vpack.c.b16 %v1514, %v1510
    %v1895 = vpack.c.b16 %v1515, %v1511
    %v1896 = vpack.c.b16 %v1516, %v1512
    %v1897 = vpack.c.b16 %v1517, %v1513
    %v1898 = vpack.c.b16 %v1522, %v1518
    %v1899 = vpack.c.b16 %v1523, %v1519
    %v1900 = vpack.c.b16 %v1524, %v1520
    %v1901 = vpack.c.b16 %v1525, %v1521
    %v1902 = vpack.c.b16 %v1530, %v1526
    %v1903 = vpack.c.b16 %v1531, %v1527
    %v1904 = vpack.c.b16 %v1532, %v1528
    %v1905 = vpack.c.b16 %v1533, %v1529
    %v1906 = vpack.c.b16 %v1538, %v1534
    %v1907 = vpack.c.b16 %v1539, %v1535
    %v1908 = vpack.c.b16 %v1540, %v1536
    %v1909 = vpack.c.b16 %v1541, %v1537
    %v1910 = vpack.c.b16 %v1546, %v1542
    %v1911 = vpack.c.b16 %v1547, %v1543
    %v1912 = vpack.c.b16 %v1548, %v1544
    %v1913 = vpack.c.b16 %v1549, %v1545
    %v1914 = vpack.c.b16 %v1554, %v1550
    %v1915 = vpack.c.b16 %v1555, %v1551
    %v1916 = vpack.c.b16 %v1556, %v1552
    %v1917 = vpack.c.b16 %v1557, %v1553
    %v1918 = vpack.c.b16 %v1562, %v1558
    %v1919 = vpack.c.b16 %v1563, %v1559
    %v1920 = vpack.c.b16 %v1564, %v1560
    %v1921 = vpack.c.b16 %v1565, %v1561
    %v1922 = vpack.c.b16 %v1570, %v1566
    %v1923 = vpack.c.b16 %v1571, %v1567
    %v1924 = vpack.c.b16 %v1572, %v1568
    %v1925 = vpack.c.b16 %v1573, %v1569
    %v1926 = vpack.c.b16 %v1578, %v1574
    %v1927 = vpack.c.b16 %v1579, %v1575
    %v1928 = vpack.c.b16 %v1580, %v1576
    %v1929 = vpack.c.b16 %v1581, %v1577
    %v1930 = vpack.c.b16 %v1586, %v1582
    %v1931 = vpack.c.b16 %v1587, %v1583
    %v1932 = vpack.c.b16 %v1588, %v1584
    %v1933 = vpack.c.b16 %v1589, %v1585
    %v1934 = vpack.c.b16 %v1594, %v1590
    %v1935 = vpack.c.b16 %v1595, %v1591
    %v1936 = vpack.c.b16 %v1596, %v1592
    %v1937 = vpack.c.b16 %v1597, %v1593
    %v1938 = vpack.c.b16 %v1602, %v1598
    %v1939 = vpack.c.b16 %v1603, %v1599
    %v1940 = vpack.c.b16 %v1604, %v1600
    %v1941 = vpack.c.b16 %v1605, %v1601
    %v1942 = vpack.c.b16 %v1610, %v1606
    %v1943 = vpack.c.b16 %v1611, %v1607
    %v1944 = vpack.c.b16 %v1612, %v1608
    %v1945 = vpack.c.b16 %v1613, %v1609
    %v1946 = vpack.c.b16 %v1618, %v1614
    %v1947 = vpack.c.b16 %v1619, %v1615
    %v1948 = vpack.c.b16 %v1620, %v1616
    %v1949 = vpack.c.b16 %v1621, %v1617
    %v1950 = vpack.c.b16 %v1626, %v1622
    %v1951 = vpack.c.b16 %v1627, %v1623
    %v1952 = vpack.c.b16 %v1628, %v1624
    %v1953 = vpack.c.b16 %v1629, %v1625
    %v1954 = vpack.c.b16 %v1634, %v1630
    %v1955 = vpack.c.b16 %v1635, %v1631
    %v1956 = vpack.c.b16 %v1636, %v1632
    %v1957 = vpack.c.b16 %v1637, %v1633
    %v1958 = vpack.c.b16 %v1642, %v1638
    %v1959 = vpack.c.b16 %v1643, %v1639
    %v1960 = vpack.c.b16 %v1644, %v1640
    %v1961 = vpack.c.b16 %v1645, %v1641
    %v1962 = vpack.c.b16 %v1650, %v1646
    %v1963 = vpack.c.b16 %v1651, %v1647
    %v1964 = vpack.c.b16 %v1652, %v1648
    %v1965 = vpack.c.b16 %v1653, %v1649
    %v1966 = vpack.c.b16 %v1658, %v1654
    %v1967 = vpack.c.b16 %v1659, %v1655
    %v1968 = vpack.c.b16 %v1660, %v1656
    %v1969 = vpack.c.b16 %v1661, %v1657
    %v1970 = vpack.c.b16 %v1666, %v1662
    %v1971 = vpack.c.b16 %v1667, %v1663
    %v1972 = vpack.c.b16 %v1668, %v1664
    %v1973 = vpack.c.b16 %v1669, %v1665
    %v1974 = vpack.c.b16 %v1674, %v1670
    %v1975 = vpack.c.b16 %v1675, %v1671
    %v1976 = vpack.c.b16 %v1676, %v1672
    %v1977 = vpack.c.b16 %v1677, %v1673
    %v1978 = vpack.c.b16 %v1682, %v1678
    %v1979 = vpack.c.b16 %v1683, %v1679
    %v1980 = vpack.c.b16 %v1684, %v1680
    %v1981 = vpack.c.b16 %v1685, %v1681
    %v1982 = vpack.c.b16 %v1690, %v1686
    %v1983 = vpack.c.b16 %v1691, %v1687
    %v1984 = vpack.c.b16 %v1692, %v1688
    %v1985 = vpack.c.b16 %v1693, %v1689
    %v1986 = vpack.c.b16 %v1698, %v1694
    %v1987 = vpack.c.b16 %v1699, %v1695
    %v1988 = vpack.c.b16 %v1700, %v1696
    %v1989 = vpack.c.b16 %v1701, %v1697
    %v1990 = vpack.c.b16 %v1706, %v1702
    %v1991 = vpack.c.b16 %v1707, %v1703
    %v1992 = vpack.c.b16 %v1708, %v1704
    %v1993 = vpack.c.b16 %v1709, %v1705
    %v1994 = vpack.c.b16 %v1714, %v1710
    %v1995 = vpack.c.b16 %v1715, %v1711
    %v1996 = vpack.c.b16 %v1716, %v1712
    %v1997 = vpack.c.b16 %v1717, %v1713
    %v1998 = vpack.c.b16 %v1722, %v1718
    %v1999 = vpack.c.b16 %v1723, %v1719
    %v2000 = vpack.c.b16 %v1724, %v1720
    %v2001 = vpack.c.b16 %v1725, %v1721
    %v2002 = vpack.c.b16 %v1730, %v1726
    %v2003 = vpack.c.b16 %v1731, %v1727
    %v2004 = vpack.c.b16 %v1732, %v1728
    %v2005 = vpack.c.b16 %v1733, %v1729
    %v2006 = vpack.c.b16 %v1738, %v1734
    %v2007 = vpack.c.b16 %v1739, %v1735
    %v2008 = vpack.c.b16 %v1740, %v1736
    %v2009 = vpack.c.b16 %v1741, %v1737
    %v2010 = vpack.c.b16 %v1746, %v1742
    %v2011 = vpack.c.b16 %v1747, %v1743
    %v2012 = vpack.c.b16 %v1748, %v1744
    %v2013 = vpack.c.b16 %v1749, %v1745
    %v2014 = vpack.c.b16 %v1754, %v1750
    %v2015 = vpack.c.b16 %v1755, %v1751
    %v2016 = vpack.c.b16 %v1756, %v1752
    %v2017 = vpack.c.b16 %v1757, %v1753
    %v2018 = vpack.c.b16 %v1762, %v1758
    %v2019 = vpack.c.b16 %v1763, %v1759
    %v2020 = vpack.c.b16 %v1764, %v1760
    %v2021 = vpack.c.b16 %v1765, %v1761
    %2278 = vmatprep.subr.bf16.mxu0 %v1795
    %2279 = vmatpush1.bf16.msra.mxu0 %v1794
    %2280 = vmatprep.subr.bf16.mxu0 %v1791
    %2281 = vmatpush1.bf16.msra.mxu0 %v1790
    %2282 = vmatprep.subr.bf16.mxu0 %v1787
    %2283 = vmatpush1.bf16.msra.mxu0 %v1786
    %2284 = vmatprep.subr.bf16.mxu0 %v1783
    %2285 = vmatpush1.bf16.msra.mxu0 %v1782
    %2286 = vmatprep.subr.bf16.mxu0 %v1779
    %2287 = vmatpush1.bf16.msra.mxu0 %v1778
    %2288 = vmatprep.subr.bf16.mxu0 %v1775
    %2289 = vmatpush1.bf16.msra.mxu0 %v1774
    %2290 = vmatprep.subr.bf16.mxu0 %v1771
    %2291 = vmatpush1.bf16.msra.mxu0 %v1770
    %2292 = vmatprep.subr.bf16.mxu0 %v1767
    %2293 = vmatpush1.bf16.msra.mxu0 %v1766
    %2294 = vmatprep.subr.bf16.mxu0 %v1827
    %2295 = vmatpush2.bf16.msra.mxu0 %v1826
    %2296 = vmatprep.subr.bf16.mxu0 %v1823
    %2297 = vmatpush2.bf16.msra.mxu0 %v1822
    %2298 = vmatprep.subr.bf16.mxu0 %v1819
    %2299 = vmatpush2.bf16.msra.mxu0 %v1818
    %2300 = vmatprep.subr.bf16.mxu0 %v1815
    %2301 = vmatpush2.bf16.msra.mxu0 %v1814
    %2302 = vmatprep.subr.bf16.mxu0 %v1811
    %2303 = vmatpush2.bf16.msra.mxu0 %v1810
    %2304 = vmatprep.subr.bf16.mxu0 %v1807
    %2305 = vmatpush2.bf16.msra.mxu0 %v1806
    %2306 = vmatprep.subr.bf16.mxu0 %v1803
    %2307 = vmatpush2.bf16.msra.mxu0 %v1802
    %2308 = vmatprep.subr.bf16.mxu0 %v1799
    %2309 = vmatpush2.bf16.msra.mxu0 %v1798
    %2310 = vmatprep.mubr.bf16.mxu0 %v713
    %2311 = vmatmul.mubr.bf16.gmra.mxu0 %v712
    %v2312 = vpop.f32.mrf.mxu0
    %v2313 = vadd.f32 %v981, %v2312
    %v2314 = vpop.f32.mrf.mxu0
    %v2315 = vadd.f32 %v985, %v2314
    %v2316 = vpop.f32.mrf.mxu0
    %v2317 = vpop.f32.mrf.mxu0
    %2318 = vdwg.mxu0
    %2319 = vmatprep.subr.bf16.mxu0 %v1859
    %2320 = vmatpush1.bf16.msra.mxu0 %v1858
    %2321 = vmatprep.subr.bf16.mxu0 %v1855
    %2322 = vmatpush1.bf16.msra.mxu0 %v1854
    %2323 = vmatprep.subr.bf16.mxu0 %v1851
    %2324 = vmatpush1.bf16.msra.mxu0 %v1850
    %2325 = vmatprep.subr.bf16.mxu0 %v1847
    %2326 = vmatpush1.bf16.msra.mxu0 %v1846
    %2327 = vmatprep.subr.bf16.mxu0 %v1843
    %2328 = vmatpush1.bf16.msra.mxu0 %v1842
    %2329 = vmatprep.subr.bf16.mxu0 %v1839
    %2330 = vmatpush1.bf16.msra.mxu0 %v1838
    %2331 = vmatprep.subr.bf16.mxu0 %v1835
    %2332 = vmatpush1.bf16.msra.mxu0 %v1834
    %2333 = vmatprep.subr.bf16.mxu0 %v1831
    %2334 = vmatpush1.bf16.msra.mxu0 %v1830
    %2335 = vmatprep.subr.bf16.mxu0 %v1891
    %2336 = vmatpush2.bf16.msra.mxu0 %v1890
    %2337 = vmatprep.subr.bf16.mxu0 %v1887
    %2338 = vmatpush2.bf16.msra.mxu0 %v1886
    %2339 = vmatprep.subr.bf16.mxu0 %v1883
    %2340 = vmatpush2.bf16.msra.mxu0 %v1882
    %2341 = vmatprep.subr.bf16.mxu0 %v1879
    %2342 = vmatpush2.bf16.msra.mxu0 %v1878
    %2343 = vmatprep.subr.bf16.mxu0 %v1875
    %2344 = vmatpush2.bf16.msra.mxu0 %v1874
    %2345 = vmatprep.subr.bf16.mxu0 %v1871
    %2346 = vmatpush2.bf16.msra.mxu0 %v1870
    %2347 = vmatprep.subr.bf16.mxu0 %v1867
    %2348 = vmatpush2.bf16.msra.mxu0 %v1866
    %2349 = vmatprep.subr.bf16.mxu0 %v1863
    %2350 = vmatpush2.bf16.msra.mxu0 %v1862
    %2351 = vmatprep.mubr.bf16.mxu0 %v715
    %2352 = vmatmul.mubr.bf16.gmra.mxu0 %v714
    %v2353 = vpop.f32.mrf.mxu0
    %v2354 = vadd.f32 %v2313, %v2353
    %v2355 = vpop.f32.mrf.mxu0
    %v2356 = vadd.f32 %v2315, %v2355
    %v2357 = vpop.f32.mrf.mxu0
    %v2358 = vpop.f32.mrf.mxu0
    %2359 = vdwg.mxu0
    %2360 = vmatprep.subr.bf16.mxu0 %v1923
    %2361 = vmatpush1.bf16.msra.mxu0 %v1922
    %2362 = vmatprep.subr.bf16.mxu0 %v1919
    %2363 = vmatpush1.bf16.msra.mxu0 %v1918
    %2364 = vmatprep.subr.bf16.mxu0 %v1915
    %2365 = vmatpush1.bf16.msra.mxu0 %v1914
    %2366 = vmatprep.subr.bf16.mxu0 %v1911
    %2367 = vmatpush1.bf16.msra.mxu0 %v1910
    %2368 = vmatprep.subr.bf16.mxu0 %v1907
    %2369 = vmatpush1.bf16.msra.mxu0 %v1906
    %2370 = vmatprep.subr.bf16.mxu0 %v1903
    %2371 = vmatpush1.bf16.msra.mxu0 %v1902
    %2372 = vmatprep.subr.bf16.mxu0 %v1899
    %2373 = vmatpush1.bf16.msra.mxu0 %v1898
    %2374 = vmatprep.subr.bf16.mxu0 %v1895
    %2375 = vmatpush1.bf16.msra.mxu0 %v1894
    %2376 = vmatprep.subr.bf16.mxu0 %v1955
    %2377 = vmatpush2.bf16.msra.mxu0 %v1954
    %2378 = vmatprep.subr.bf16.mxu0 %v1951
    %2379 = vmatpush2.bf16.msra.mxu0 %v1950
    %2380 = vmatprep.subr.bf16.mxu0 %v1947
    %2381 = vmatpush2.bf16.msra.mxu0 %v1946
    %2382 = vmatprep.subr.bf16.mxu0 %v1943
    %2383 = vmatpush2.bf16.msra.mxu0 %v1942
    %2384 = vmatprep.subr.bf16.mxu0 %v1939
    %2385 = vmatpush2.bf16.msra.mxu0 %v1938
    %2386 = vmatprep.subr.bf16.mxu0 %v1935
    %2387 = vmatpush2.bf16.msra.mxu0 %v1934
    %2388 = vmatprep.subr.bf16.mxu0 %v1931
    %2389 = vmatpush2.bf16.msra.mxu0 %v1930
    %2390 = vmatprep.subr.bf16.mxu0 %v1927
    %2391 = vmatpush2.bf16.msra.mxu0 %v1926
    %2392 = vmatprep.mubr.bf16.mxu0 %v717
    %2393 = vmatmul.mubr.bf16.gmra.mxu0 %v716
    %v2394 = vpop.f32.mrf.mxu0
    %v2395 = vadd.f32 %v2354, %v2394
    %v2396 = vpop.f32.mrf.mxu0
    %v2397 = vadd.f32 %v2356, %v2396
    %v2398 = vpop.f32.mrf.mxu0
    %v2399 = vpop.f32.mrf.mxu0
    %2400 = vdwg.mxu0
    %2401 = vmatprep.subr.bf16.mxu0 %v1987
    %2402 = vmatpush1.bf16.msra.mxu0 %v1986
    %2403 = vmatprep.subr.bf16.mxu0 %v1983
    %2404 = vmatpush1.bf16.msra.mxu0 %v1982
    %2405 = vmatprep.subr.bf16.mxu0 %v1979
    %2406 = vmatpush1.bf16.msra.mxu0 %v1978
    %2407 = vmatprep.subr.bf16.mxu0 %v1975
    %2408 = vmatpush1.bf16.msra.mxu0 %v1974
    %2409 = vmatprep.subr.bf16.mxu0 %v1971
    %2410 = vmatpush1.bf16.msra.mxu0 %v1970
    %2411 = vmatprep.subr.bf16.mxu0 %v1967
    %2412 = vmatpush1.bf16.msra.mxu0 %v1966
    %2413 = vmatprep.subr.bf16.mxu0 %v1963
    %2414 = vmatpush1.bf16.msra.mxu0 %v1962
    %2415 = vmatprep.subr.bf16.mxu0 %v1959
    %2416 = vmatpush1.bf16.msra.mxu0 %v1958
    %2417 = vmatprep.subr.bf16.mxu0 %v2019
    %2418 = vmatpush2.bf16.msra.mxu0 %v2018
    %2419 = vmatprep.subr.bf16.mxu0 %v2015
    %2420 = vmatpush2.bf16.msra.mxu0 %v2014
    %2421 = vmatprep.subr.bf16.mxu0 %v2011
    %2422 = vmatpush2.bf16.msra.mxu0 %v2010
    %2423 = vmatprep.subr.bf16.mxu0 %v2007
    %2424 = vmatpush2.bf16.msra.mxu0 %v2006
    %2425 = vmatprep.subr.bf16.mxu0 %v2003
    %2426 = vmatpush2.bf16.msra.mxu0 %v2002
    %2427 = vmatprep.subr.bf16.mxu0 %v1999
    %2428 = vmatpush2.bf16.msra.mxu0 %v1998
    %2429 = vmatprep.subr.bf16.mxu0 %v1995
    %2430 = vmatpush2.bf16.msra.mxu0 %v1994
    %2431 = vmatprep.subr.bf16.mxu0 %v1991
    %2432 = vmatpush2.bf16.msra.mxu0 %v1990
    %2433 = vmatprep.mubr.bf16.mxu0 %v719
    %2434 = vmatmul.mubr.bf16.gmra.mxu0 %v718
    %v2435 = vpop.f32.mrf.mxu0
    %v2436 = vadd.f32 %v2395, %v2435
    %v2437 = vpop.f32.mrf.mxu0
    %v2438 = vadd.f32 %v2397, %v2437
    %v2439 = vpop.f32.mrf.mxu0
    %v2440 = vpop.f32.mrf.mxu0
    %2441 = vdwg.mxu0
    %2442 = vmatprep.subr.bf16.mxu0 %v1797
    %2443 = vmatpush1.bf16.msra.mxu0 %v1796
    %2444 = vmatprep.subr.bf16.mxu0 %v1793
    %2445 = vmatpush1.bf16.msra.mxu0 %v1792
    %2446 = vmatprep.subr.bf16.mxu0 %v1789
    %2447 = vmatpush1.bf16.msra.mxu0 %v1788
    %2448 = vmatprep.subr.bf16.mxu0 %v1785
    %2449 = vmatpush1.bf16.msra.mxu0 %v1784
    %2450 = vmatprep.subr.bf16.mxu0 %v1781
    %2451 = vmatpush1.bf16.msra.mxu0 %v1780
    %2452 = vmatprep.subr.bf16.mxu0 %v1777
    %2453 = vmatpush1.bf16.msra.mxu0 %v1776
    %2454 = vmatprep.subr.bf16.mxu0 %v1773
    %2455 = vmatpush1.bf16.msra.mxu0 %v1772
    %2456 = vmatprep.subr.bf16.mxu0 %v1769
    %2457 = vmatpush1.bf16.msra.mxu0 %v1768
    %2458 = vmatprep.subr.bf16.mxu0 %v1829
    %2459 = vmatpush2.bf16.msra.mxu0 %v1828
    %2460 = vmatprep.subr.bf16.mxu0 %v1825
    %2461 = vmatpush2.bf16.msra.mxu0 %v1824
    %2462 = vmatprep.subr.bf16.mxu0 %v1821
    %2463 = vmatpush2.bf16.msra.mxu0 %v1820
    %2464 = vmatprep.subr.bf16.mxu0 %v1817
    %2465 = vmatpush2.bf16.msra.mxu0 %v1816
    %2466 = vmatprep.subr.bf16.mxu0 %v1813
    %2467 = vmatpush2.bf16.msra.mxu0 %v1812
    %2468 = vmatprep.subr.bf16.mxu0 %v1809
    %2469 = vmatpush2.bf16.msra.mxu0 %v1808
    %2470 = vmatprep.subr.bf16.mxu0 %v1805
    %2471 = vmatpush2.bf16.msra.mxu0 %v1804
    %2472 = vmatprep.subr.bf16.mxu0 %v1801
    %2473 = vmatpush2.bf16.msra.mxu0 %v1800
    %2474 = vmatprep.mubr.bf16.mxu0 %v713
    %2475 = vmatmul.mubr.bf16.gmra.mxu0 %v712
    %v2476 = vpop.f32.mrf.mxu0
    %v2477 = vadd.f32 %v989, %v2476
    %v2478 = vpop.f32.mrf.mxu0
    %v2479 = vadd.f32 %v993, %v2478
    %v2480 = vpop.f32.mrf.mxu0
    %v2481 = vpop.f32.mrf.mxu0
    %2482 = vdwg.mxu0
    %2483 = vmatprep.subr.bf16.mxu0 %v1861
    %2484 = vmatpush1.bf16.msra.mxu0 %v1860
    %2485 = vmatprep.subr.bf16.mxu0 %v1857
    %2486 = vmatpush1.bf16.msra.mxu0 %v1856
    %2487 = vmatprep.subr.bf16.mxu0 %v1853
    %2488 = vmatpush1.bf16.msra.mxu0 %v1852
    %2489 = vmatprep.subr.bf16.mxu0 %v1849
    %2490 = vmatpush1.bf16.msra.mxu0 %v1848
    %2491 = vmatprep.subr.bf16.mxu0 %v1845
    %2492 = vmatpush1.bf16.msra.mxu0 %v1844
    %2493 = vmatprep.subr.bf16.mxu0 %v1841
    %2494 = vmatpush1.bf16.msra.mxu0 %v1840
    %2495 = vmatprep.subr.bf16.mxu0 %v1837
    %2496 = vmatpush1.bf16.msra.mxu0 %v1836
    %2497 = vmatprep.subr.bf16.mxu0 %v1833
    %2498 = vmatpush1.bf16.msra.mxu0 %v1832
    %2499 = vmatprep.subr.bf16.mxu0 %v1893
    %2500 = vmatpush2.bf16.msra.mxu0 %v1892
    %2501 = vmatprep.subr.bf16.mxu0 %v1889
    %2502 = vmatpush2.bf16.msra.mxu0 %v1888
    %2503 = vmatprep.subr.bf16.mxu0 %v1885
    %2504 = vmatpush2.bf16.msra.mxu0 %v1884
    %2505 = vmatprep.subr.bf16.mxu0 %v1881
    %2506 = vmatpush2.bf16.msra.mxu0 %v1880
    %2507 = vmatprep.subr.bf16.mxu0 %v1877
    %2508 = vmatpush2.bf16.msra.mxu0 %v1876
    %2509 = vmatprep.subr.bf16.mxu0 %v1873
    %2510 = vmatpush2.bf16.msra.mxu0 %v1872
    %2511 = vmatprep.subr.bf16.mxu0 %v1869
    %2512 = vmatpush2.bf16.msra.mxu0 %v1868
    %2513 = vmatprep.subr.bf16.mxu0 %v1865
    %2514 = vmatpush2.bf16.msra.mxu0 %v1864
    %2515 = vmatprep.mubr.bf16.mxu0 %v715
    %2516 = vmatmul.mubr.bf16.gmra.mxu0 %v714
    %v2517 = vpop.f32.mrf.mxu0
    %v2518 = vadd.f32 %v2477, %v2517
    %v2519 = vpop.f32.mrf.mxu0
    %v2520 = vadd.f32 %v2479, %v2519
    %v2521 = vpop.f32.mrf.mxu0
    %v2522 = vpop.f32.mrf.mxu0
    %2523 = vdwg.mxu0
    %2524 = vmatprep.subr.bf16.mxu0 %v1925
    %2525 = vmatpush1.bf16.msra.mxu0 %v1924
    %2526 = vmatprep.subr.bf16.mxu0 %v1921
    %2527 = vmatpush1.bf16.msra.mxu0 %v1920
    %2528 = vmatprep.subr.bf16.mxu0 %v1917
    %2529 = vmatpush1.bf16.msra.mxu0 %v1916
    %2530 = vmatprep.subr.bf16.mxu0 %v1913
    %2531 = vmatpush1.bf16.msra.mxu0 %v1912
    %2532 = vmatprep.subr.bf16.mxu0 %v1909
    %2533 = vmatpush1.bf16.msra.mxu0 %v1908
    %2534 = vmatprep.subr.bf16.mxu0 %v1905
    %2535 = vmatpush1.bf16.msra.mxu0 %v1904
    %2536 = vmatprep.subr.bf16.mxu0 %v1901
    %2537 = vmatpush1.bf16.msra.mxu0 %v1900
    %2538 = vmatprep.subr.bf16.mxu0 %v1897
    %2539 = vmatpush1.bf16.msra.mxu0 %v1896
    %2540 = vmatprep.subr.bf16.mxu0 %v1957
    %2541 = vmatpush2.bf16.msra.mxu0 %v1956
    %2542 = vmatprep.subr.bf16.mxu0 %v1953
    %2543 = vmatpush2.bf16.msra.mxu0 %v1952
    %2544 = vmatprep.subr.bf16.mxu0 %v1949
    %2545 = vmatpush2.bf16.msra.mxu0 %v1948
    %2546 = vmatprep.subr.bf16.mxu0 %v1945
    %2547 = vmatpush2.bf16.msra.mxu0 %v1944
    %2548 = vmatprep.subr.bf16.mxu0 %v1941
    %2549 = vmatpush2.bf16.msra.mxu0 %v1940
    %2550 = vmatprep.subr.bf16.mxu0 %v1937
    %2551 = vmatpush2.bf16.msra.mxu0 %v1936
    %2552 = vmatprep.subr.bf16.mxu0 %v1933
    %2553 = vmatpush2.bf16.msra.mxu0 %v1932
    %2554 = vmatprep.subr.bf16.mxu0 %v1929
    %2555 = vmatpush2.bf16.msra.mxu0 %v1928
    %2556 = vmatprep.mubr.bf16.mxu0 %v717
    %2557 = vmatmul.mubr.bf16.gmra.mxu0 %v716
    %v2558 = vpop.f32.mrf.mxu0
    %v2559 = vadd.f32 %v2518, %v2558
    %v2560 = vpop.f32.mrf.mxu0
    %v2561 = vadd.f32 %v2520, %v2560
    %v2562 = vpop.f32.mrf.mxu0
    %v2563 = vpop.f32.mrf.mxu0
    %2564 = vdwg.mxu0
    %2565 = vmatprep.subr.bf16.mxu0 %v1989
    %2566 = vmatpush1.bf16.msra.mxu0 %v1988
    %2567 = vmatprep.subr.bf16.mxu0 %v1985
    %2568 = vmatpush1.bf16.msra.mxu0 %v1984
    %2569 = vmatprep.subr.bf16.mxu0 %v1981
    %2570 = vmatpush1.bf16.msra.mxu0 %v1980
    %2571 = vmatprep.subr.bf16.mxu0 %v1977
    %2572 = vmatpush1.bf16.msra.mxu0 %v1976
    %2573 = vmatprep.subr.bf16.mxu0 %v1973
    %2574 = vmatpush1.bf16.msra.mxu0 %v1972
    %2575 = vmatprep.subr.bf16.mxu0 %v1969
    %2576 = vmatpush1.bf16.msra.mxu0 %v1968
    %2577 = vmatprep.subr.bf16.mxu0 %v1965
    %2578 = vmatpush1.bf16.msra.mxu0 %v1964
    %2579 = vmatprep.subr.bf16.mxu0 %v1961
    %2580 = vmatpush1.bf16.msra.mxu0 %v1960
    %2581 = vmatprep.subr.bf16.mxu0 %v2021
    %2582 = vmatpush2.bf16.msra.mxu0 %v2020
    %2583 = vmatprep.subr.bf16.mxu0 %v2017
    %2584 = vmatpush2.bf16.msra.mxu0 %v2016
    %2585 = vmatprep.subr.bf16.mxu0 %v2013
    %2586 = vmatpush2.bf16.msra.mxu0 %v2012
    %2587 = vmatprep.subr.bf16.mxu0 %v2009
    %2588 = vmatpush2.bf16.msra.mxu0 %v2008
    %2589 = vmatprep.subr.bf16.mxu0 %v2005
    %2590 = vmatpush2.bf16.msra.mxu0 %v2004
    %2591 = vmatprep.subr.bf16.mxu0 %v2001
    %2592 = vmatpush2.bf16.msra.mxu0 %v2000
    %2593 = vmatprep.subr.bf16.mxu0 %v1997
    %2594 = vmatpush2.bf16.msra.mxu0 %v1996
    %2595 = vmatprep.subr.bf16.mxu0 %v1993
    %2596 = vmatpush2.bf16.msra.mxu0 %v1992
    %2597 = vmatprep.mubr.bf16.mxu0 %v719
    %2598 = vmatmul.mubr.bf16.gmra.mxu0 %v718
    %v2599 = vpop.f32.mrf.mxu0
    %v2600 = vadd.f32 %v2559, %v2599
    %v2601 = vpop.f32.mrf.mxu0
    %v2602 = vadd.f32 %v2561, %v2601
    %v2603 = vpop.f32.mrf.mxu0
    %v2604 = vpop.f32.mrf.mxu0
    %2605 = vdwg.mxu0
    %v2606 = vmax.f32 %v2436, 0.0
    %v2607 = vmax.f32 %v2438, 0.0
    %v2608 = vmax.f32 %v2600, 0.0
    %v2609 = vmax.f32 %v2602, 0.0
    %v2610 = vpack.c.bf16 %v2606, %v2606
    %v2611 = vpack.c.bf16 %v2607, %v2607
    %v2612 = vpack.c.bf16 %v2608, %v2608
    %v2613 = vpack.c.bf16 %v2609, %v2609
    %v2614 = vld [vmem:[#allocation10] sm:$0xf]
    %v2615 = vld [vmem:[#allocation10 + $0x4] sm:$0xf]
    %v2616 = vld [vmem:[#allocation10 + $0x8] sm:$0xf]
    %v2617 = vld [vmem:[#allocation10 + $0xc] sm:$0xf]
    %v2618 = vld [vmem:[#allocation10 + $0x10] sm:$0xf]
    %v2619 = vld [vmem:[#allocation10 + $0x14] sm:$0xf]
    %v2620 = vld [vmem:[#allocation10 + $0x18] sm:$0xf]
    %v2621 = vld [vmem:[#allocation10 + $0x1c] sm:$0xf]
    %v2622 = vld [vmem:[#allocation10 + $0x20] sm:$0xf]
    %v2623 = vld [vmem:[#allocation10 + $0x24] sm:$0xf]
    %v2624 = vld [vmem:[#allocation10 + $0x28] sm:$0xf]
    %v2625 = vld [vmem:[#allocation10 + $0x2c] sm:$0xf]
    %v2626 = vld [vmem:[#allocation10 + $0x30] sm:$0xf]
    %v2627 = vld [vmem:[#allocation10 + $0x34] sm:$0xf]
    %v2628 = vld [vmem:[#allocation10 + $0x38] sm:$0xf]
    %v2629 = vld [vmem:[#allocation10 + $0x3c] sm:$0xf]
    %v2630 = vld [vmem:[#allocation10 + $0x40] sm:$0xf]
    %v2631 = vld [vmem:[#allocation10 + $0x44] sm:$0xf]
    %v2632 = vld [vmem:[#allocation10 + $0x48] sm:$0xf]
    %v2633 = vld [vmem:[#allocation10 + $0x4c] sm:$0xf]
    %v2634 = vld [vmem:[#allocation10 + $0x50] sm:$0xf]
    %v2635 = vld [vmem:[#allocation10 + $0x54] sm:$0xf]
    %v2636 = vld [vmem:[#allocation10 + $0x58] sm:$0xf]
    %v2637 = vld [vmem:[#allocation10 + $0x5c] sm:$0xf]
    %v2638 = vld [vmem:[#allocation10 + $0x60] sm:$0xf]
    %v2639 = vld [vmem:[#allocation10 + $0x64] sm:$0xf]
    %v2640 = vld [vmem:[#allocation10 + $0x68] sm:$0xf]
    %v2641 = vld [vmem:[#allocation10 + $0x6c] sm:$0xf]
    %v2642 = vld [vmem:[#allocation10 + $0x70] sm:$0xf]
    %v2643 = vld [vmem:[#allocation10 + $0x74] sm:$0xf]
    %v2644 = vld [vmem:[#allocation10 + $0x78] sm:$0xf]
    %v2645 = vld [vmem:[#allocation10 + $0x7c] sm:$0xf]
    %v2646 = vld [vmem:[#allocation10 + $0x80] sm:$0xf]
    %v2647 = vld [vmem:[#allocation10 + $0x84] sm:$0xf]
    %v2648 = vld [vmem:[#allocation10 + $0x88] sm:$0xf]
    %v2649 = vld [vmem:[#allocation10 + $0x8c] sm:$0xf]
    %v2650 = vld [vmem:[#allocation10 + $0x90] sm:$0xf]
    %v2651 = vld [vmem:[#allocation10 + $0x94] sm:$0xf]
    %v2652 = vld [vmem:[#allocation10 + $0x98] sm:$0xf]
    %v2653 = vld [vmem:[#allocation10 + $0x9c] sm:$0xf]
    %v2654 = vld [vmem:[#allocation10 + $0xa0] sm:$0xf]
    %v2655 = vld [vmem:[#allocation10 + $0xa4] sm:$0xf]
    %v2656 = vld [vmem:[#allocation10 + $0xa8] sm:$0xf]
    %v2657 = vld [vmem:[#allocation10 + $0xac] sm:$0xf]
    %v2658 = vld [vmem:[#allocation10 + $0xb0] sm:$0xf]
    %v2659 = vld [vmem:[#allocation10 + $0xb4] sm:$0xf]
    %v2660 = vld [vmem:[#allocation10 + $0xb8] sm:$0xf]
    %v2661 = vld [vmem:[#allocation10 + $0xbc] sm:$0xf]
    %v2662 = vld [vmem:[#allocation10 + $0xc0] sm:$0xf]
    %v2663 = vld [vmem:[#allocation10 + $0xc4] sm:$0xf]
    %v2664 = vld [vmem:[#allocation10 + $0xc8] sm:$0xf]
    %v2665 = vld [vmem:[#allocation10 + $0xcc] sm:$0xf]
    %v2666 = vld [vmem:[#allocation10 + $0xd0] sm:$0xf]
    %v2667 = vld [vmem:[#allocation10 + $0xd4] sm:$0xf]
    %v2668 = vld [vmem:[#allocation10 + $0xd8] sm:$0xf]
    %v2669 = vld [vmem:[#allocation10 + $0xdc] sm:$0xf]
    %v2670 = vld [vmem:[#allocation10 + $0xe0] sm:$0xf]
    %v2671 = vld [vmem:[#allocation10 + $0xe4] sm:$0xf]
    %v2672 = vld [vmem:[#allocation10 + $0xe8] sm:$0xf]
    %v2673 = vld [vmem:[#allocation10 + $0xec] sm:$0xf]
    %v2674 = vld [vmem:[#allocation10 + $0xf0] sm:$0xf]
    %v2675 = vld [vmem:[#allocation10 + $0xf4] sm:$0xf]
    %v2676 = vld [vmem:[#allocation10 + $0xf8] sm:$0xf]
    %v2677 = vld [vmem:[#allocation10 + $0xfc] sm:$0xf]
    %v2678 = vld [vmem:[%s6] sm:$0x1]
    %v2680 = vlaneseq
    %v2681 = vshrl.u32 %v2680, 7
    %v2682 = vsub.s32 0, %v2681
    %v2683 = vrot.slane %v2678, %v2682
    %v2749 = vunpack.c.l.b16 %v2614
    %v2750 = vunpack.c.l.b16 %v2615
    %v2751 = vunpack.c.l.b16 %v2616
    %v2752 = vunpack.c.l.b16 %v2617
    %v2753 = vunpack.c.l.b16 %v2618
    %v2754 = vunpack.c.l.b16 %v2619
    %v2755 = vunpack.c.l.b16 %v2620
    %v2756 = vunpack.c.l.b16 %v2621
    %v2757 = vunpack.c.l.b16 %v2622
    %v2758 = vunpack.c.l.b16 %v2623
    %v2759 = vunpack.c.l.b16 %v2624
    %v2760 = vunpack.c.l.b16 %v2625
    %v2761 = vunpack.c.l.b16 %v2626
    %v2762 = vunpack.c.l.b16 %v2627
    %v2763 = vunpack.c.l.b16 %v2628
    %v2764 = vunpack.c.l.b16 %v2629
    %v2765 = vunpack.c.l.b16 %v2630
    %v2766 = vunpack.c.l.b16 %v2631
    %v2767 = vunpack.c.l.b16 %v2632
    %v2768 = vunpack.c.l.b16 %v2633
    %v2769 = vunpack.c.l.b16 %v2634
    %v2770 = vunpack.c.l.b16 %v2635
    %v2771 = vunpack.c.l.b16 %v2636
    %v2772 = vunpack.c.l.b16 %v2637
    %v2773 = vunpack.c.l.b16 %v2638
    %v2774 = vunpack.c.l.b16 %v2639
    %v2775 = vunpack.c.l.b16 %v2640
    %v2776 = vunpack.c.l.b16 %v2641
    %v2777 = vunpack.c.l.b16 %v2642
    %v2778 = vunpack.c.l.b16 %v2643
    %v2779 = vunpack.c.l.b16 %v2644
    %v2780 = vunpack.c.l.b16 %v2645
    %v2781 = vunpack.c.l.b16 %v2646
    %v2782 = vunpack.c.l.b16 %v2647
    %v2783 = vunpack.c.l.b16 %v2648
    %v2784 = vunpack.c.l.b16 %v2649
    %v2785 = vunpack.c.l.b16 %v2650
    %v2786 = vunpack.c.l.b16 %v2651
    %v2787 = vunpack.c.l.b16 %v2652
    %v2788 = vunpack.c.l.b16 %v2653
    %v2789 = vunpack.c.l.b16 %v2654
    %v2790 = vunpack.c.l.b16 %v2655
    %v2791 = vunpack.c.l.b16 %v2656
    %v2792 = vunpack.c.l.b16 %v2657
    %v2793 = vunpack.c.l.b16 %v2658
    %v2794 = vunpack.c.l.b16 %v2659
    %v2795 = vunpack.c.l.b16 %v2660
    %v2796 = vunpack.c.l.b16 %v2661
    %v2797 = vunpack.c.l.b16 %v2662
    %v2798 = vunpack.c.l.b16 %v2663
    %v2799 = vunpack.c.l.b16 %v2664
    %v2800 = vunpack.c.l.b16 %v2665
    %v2801 = vunpack.c.l.b16 %v2666
    %v2802 = vunpack.c.l.b16 %v2667
    %v2803 = vunpack.c.l.b16 %v2668
    %v2804 = vunpack.c.l.b16 %v2669
    %v2805 = vunpack.c.l.b16 %v2670
    %v2806 = vunpack.c.l.b16 %v2671
    %v2807 = vunpack.c.l.b16 %v2672
    %v2808 = vunpack.c.l.b16 %v2673
    %v2809 = vunpack.c.l.b16 %v2674
    %v2810 = vunpack.c.l.b16 %v2675
    %v2811 = vunpack.c.l.b16 %v2676
    %v2812 = vunpack.c.l.b16 %v2677
    %v2813 = vpack.c.b16 %v2750, %v2749
    %v2814 = vpack.c.b16 %v2752, %v2751
    %v2815 = vpack.c.b16 %v2754, %v2753
    %v2816 = vpack.c.b16 %v2756, %v2755
    %v2817 = vpack.c.b16 %v2758, %v2757
    %v2818 = vpack.c.b16 %v2760, %v2759
    %v2819 = vpack.c.b16 %v2762, %v2761
    %v2820 = vpack.c.b16 %v2764, %v2763
    %v2821 = vpack.c.b16 %v2766, %v2765
    %v2822 = vpack.c.b16 %v2768, %v2767
    %v2823 = vpack.c.b16 %v2770, %v2769
    %v2824 = vpack.c.b16 %v2772, %v2771
    %v2825 = vpack.c.b16 %v2774, %v2773
    %v2826 = vpack.c.b16 %v2776, %v2775
    %v2827 = vpack.c.b16 %v2778, %v2777
    %v2828 = vpack.c.b16 %v2780, %v2779
    %v2829 = vpack.c.b16 %v2782, %v2781
    %v2830 = vpack.c.b16 %v2784, %v2783
    %v2831 = vpack.c.b16 %v2786, %v2785
    %v2832 = vpack.c.b16 %v2788, %v2787
    %v2833 = vpack.c.b16 %v2790, %v2789
    %v2834 = vpack.c.b16 %v2792, %v2791
    %v2835 = vpack.c.b16 %v2794, %v2793
    %v2836 = vpack.c.b16 %v2796, %v2795
    %v2837 = vpack.c.b16 %v2798, %v2797
    %v2838 = vpack.c.b16 %v2800, %v2799
    %v2839 = vpack.c.b16 %v2802, %v2801
    %v2840 = vpack.c.b16 %v2804, %v2803
    %v2841 = vpack.c.b16 %v2806, %v2805
    %v2842 = vpack.c.b16 %v2808, %v2807
    %v2843 = vpack.c.b16 %v2810, %v2809
    %v2844 = vpack.c.b16 %v2812, %v2811
    %2877 = vmatprep.subr.bf16.mxu0 0
    %2878 = vmatpush1.bf16.msra.mxu0 %v2820
    %2879 = vmatprep.subr.bf16.mxu0 0
    %2880 = vmatpush1.bf16.msra.mxu0 %v2819
    %2881 = vmatprep.subr.bf16.mxu0 0
    %2882 = vmatpush1.bf16.msra.mxu0 %v2818
    %2883 = vmatprep.subr.bf16.mxu0 0
    %2884 = vmatpush1.bf16.msra.mxu0 %v2817
    %2885 = vmatprep.subr.bf16.mxu0 0
    %2886 = vmatpush1.bf16.msra.mxu0 %v2816
    %2887 = vmatprep.subr.bf16.mxu0 0
    %2888 = vmatpush1.bf16.msra.mxu0 %v2815
    %2889 = vmatprep.subr.bf16.mxu0 0
    %2890 = vmatpush1.bf16.msra.mxu0 %v2814
    %2891 = vmatprep.subr.bf16.mxu0 0
    %2892 = vmatpush1.bf16.msra.mxu0 %v2813
    %2893 = vmatprep.subr.bf16.mxu0 0
    %2894 = vmatpush2.bf16.msra.mxu0 %v2828
    %2895 = vmatprep.subr.bf16.mxu0 0
    %2896 = vmatpush2.bf16.msra.mxu0 %v2827
    %2897 = vmatprep.subr.bf16.mxu0 0
    %2898 = vmatpush2.bf16.msra.mxu0 %v2826
    %2899 = vmatprep.subr.bf16.mxu0 0
    %2900 = vmatpush2.bf16.msra.mxu0 %v2825
    %2901 = vmatprep.subr.bf16.mxu0 0
    %2902 = vmatpush2.bf16.msra.mxu0 %v2824
    %2903 = vmatprep.subr.bf16.mxu0 0
    %2904 = vmatpush2.bf16.msra.mxu0 %v2823
    %2905 = vmatprep.subr.bf16.mxu0 0
    %2906 = vmatpush2.bf16.msra.mxu0 %v2822
    %2907 = vmatprep.subr.bf16.mxu0 0
    %2908 = vmatpush2.bf16.msra.mxu0 %v2821
    %2909 = vmatprep.mubr.bf16.mxu0 %v2611
    %2910 = vmatmul.mubr.bf16.gmra.mxu0 %v2610
    %v2911 = vpop.f32.mrf.mxu0
    %v2912 = vadd.f32 %v2683, %v2911
    %v2913 = vpop.f32.mrf.mxu0
    %v2914 = vpop.f32.mrf.mxu0
    %v2915 = vpop.f32.mrf.mxu0
    %2916 = vdwg.mxu0
    %2917 = vmatprep.subr.bf16.mxu0 0
    %2918 = vmatpush1.bf16.msra.mxu0 %v2836
    %2919 = vmatprep.subr.bf16.mxu0 0
    %2920 = vmatpush1.bf16.msra.mxu0 %v2835
    %2921 = vmatprep.subr.bf16.mxu0 0
    %2922 = vmatpush1.bf16.msra.mxu0 %v2834
    %2923 = vmatprep.subr.bf16.mxu0 0
    %2924 = vmatpush1.bf16.msra.mxu0 %v2833
    %2925 = vmatprep.subr.bf16.mxu0 0
    %2926 = vmatpush1.bf16.msra.mxu0 %v2832
    %2927 = vmatprep.subr.bf16.mxu0 0
    %2928 = vmatpush1.bf16.msra.mxu0 %v2831
    %2929 = vmatprep.subr.bf16.mxu0 0
    %2930 = vmatpush1.bf16.msra.mxu0 %v2830
    %2931 = vmatprep.subr.bf16.mxu0 0
    %2932 = vmatpush1.bf16.msra.mxu0 %v2829
    %2933 = vmatprep.subr.bf16.mxu0 0
    %2934 = vmatpush2.bf16.msra.mxu0 %v2844
    %2935 = vmatprep.subr.bf16.mxu0 0
    %2936 = vmatpush2.bf16.msra.mxu0 %v2843
    %2937 = vmatprep.subr.bf16.mxu0 0
    %2938 = vmatpush2.bf16.msra.mxu0 %v2842
    %2939 = vmatprep.subr.bf16.mxu0 0
    %2940 = vmatpush2.bf16.msra.mxu0 %v2841
    %2941 = vmatprep.subr.bf16.mxu0 0
    %2942 = vmatpush2.bf16.msra.mxu0 %v2840
    %2943 = vmatprep.subr.bf16.mxu0 0
    %2944 = vmatpush2.bf16.msra.mxu0 %v2839
    %2945 = vmatprep.subr.bf16.mxu0 0
    %2946 = vmatpush2.bf16.msra.mxu0 %v2838
    %2947 = vmatprep.subr.bf16.mxu0 0
    %2948 = vmatpush2.bf16.msra.mxu0 %v2837
    %2949 = vmatprep.mubr.bf16.mxu0 %v2613
    %2950 = vmatmul.mubr.bf16.gmra.mxu0 %v2612
    %v2951 = vpop.f32.mrf.mxu0
    %v2952 = vadd.f32 %v2912, %v2951
    %v2953 = vpop.f32.mrf.mxu0
    %v2954 = vpop.f32.mrf.mxu0
    %v2955 = vpop.f32.mrf.mxu0
    %2956 = vdwg.mxu0
    %v2957 = vmax.f32 %v2952, 0.0
    %v2958 = vpack.c.bf16 %v2957, %v2957
    %v2959 = vld [vmem:[#allocation11] sm:$0xf]
    %v2960 = vld [vmem:[#allocation11 + $0x4] sm:$0xf]
    %v2961 = vld [vmem:[#allocation11 + $0x8] sm:$0xf]
    %v2962 = vld [vmem:[#allocation11 + $0xc] sm:$0xf]
    %v2963 = vld [vmem:[#allocation11 + $0x10] sm:$0xf]
    %v2964 = vld [vmem:[#allocation11 + $0x14] sm:$0xf]
    %v2965 = vld [vmem:[#allocation11 + $0x18] sm:$0xf]
    %v2966 = vld [vmem:[#allocation11 + $0x1c] sm:$0xf]
    %v2967 = vld [vmem:[#allocation11 + $0x20] sm:$0xf]
    %v2968 = vld [vmem:[#allocation11 + $0x24] sm:$0xf]
    %v2969 = vld [vmem:[#allocation11 + $0x28] sm:$0xf]
    %v2970 = vld [vmem:[#allocation11 + $0x2c] sm:$0xf]
    %v2971 = vld [vmem:[#allocation11 + $0x30] sm:$0xf]
    %v2972 = vld [vmem:[#allocation11 + $0x34] sm:$0xf]
    %v2973 = vld [vmem:[#allocation11 + $0x38] sm:$0xf]
    %v2974 = vld [vmem:[#allocation11 + $0x3c] sm:$0xf]
    %v2975 = vld [vmem:[%s8] sm:$0x1]
    %v2977 = vlaneseq
    %v2978 = vshrl.u32 %v2977, 7
    %v2979 = vsub.s32 0, %v2978
    %v2980 = vrot.slane %v2975, %v2979
    %v2998 = vunpack.c.l.b16 %v2959
    %v2999 = vunpack.c.l.b16 %v2960
    %v3000 = vunpack.c.l.b16 %v2961
    %v3001 = vunpack.c.l.b16 %v2962
    %v3002 = vunpack.c.l.b16 %v2963
    %v3003 = vunpack.c.l.b16 %v2964
    %v3004 = vunpack.c.l.b16 %v2965
    %v3005 = vunpack.c.l.b16 %v2966
    %v3006 = vunpack.c.l.b16 %v2967
    %v3007 = vunpack.c.l.b16 %v2968
    %v3008 = vunpack.c.l.b16 %v2969
    %v3009 = vunpack.c.l.b16 %v2970
    %v3010 = vunpack.c.l.b16 %v2971
    %v3011 = vunpack.c.l.b16 %v2972
    %v3012 = vunpack.c.l.b16 %v2973
    %v3013 = vunpack.c.l.b16 %v2974
    %v3014 = vpack.c.b16 %v2999, %v2998
    %v3015 = vpack.c.b16 %v3001, %v3000
    %v3016 = vpack.c.b16 %v3003, %v3002
    %v3017 = vpack.c.b16 %v3005, %v3004
    %v3018 = vpack.c.b16 %v3007, %v3006
    %v3019 = vpack.c.b16 %v3009, %v3008
    %v3020 = vpack.c.b16 %v3011, %v3010
    %v3021 = vpack.c.b16 %v3013, %v3012
    %3030 = vmatprep.subr.bf16.mxu0 0
    %3031 = vmatpush1.bf16.msra.mxu0 %v3021
    %3032 = vmatprep.subr.bf16.mxu0 0
    %3033 = vmatpush1.bf16.msra.mxu0 %v3020
    %3034 = vmatprep.subr.bf16.mxu0 0
    %3035 = vmatpush1.bf16.msra.mxu0 %v3019
    %3036 = vmatprep.subr.bf16.mxu0 0
    %3037 = vmatpush1.bf16.msra.mxu0 %v3018
    %3038 = vmatprep.subr.bf16.mxu0 0
    %3039 = vmatpush1.bf16.msra.mxu0 %v3017
    %3040 = vmatprep.subr.bf16.mxu0 0
    %3041 = vmatpush1.bf16.msra.mxu0 %v3016
    %3042 = vmatprep.subr.bf16.mxu0 0
    %3043 = vmatpush1.bf16.msra.mxu0 %v3015
    %3044 = vmatprep.subr.bf16.mxu0 0
    %3045 = vmatpush1.bf16.msra.mxu0 %v3014
    %3046 = vmatprep.subr.bf16.mxu0 0
    %3047 = vmatpush2.bf16.msra.mxu0 0
    %3048 = vmatprep.subr.bf16.mxu0 0
    %3049 = vmatpush2.bf16.msra.mxu0 0
    %3050 = vmatprep.subr.bf16.mxu0 0
    %3051 = vmatpush2.bf16.msra.mxu0 0
    %3052 = vmatprep.subr.bf16.mxu0 0
    %3053 = vmatpush2.bf16.msra.mxu0 0
    %3054 = vmatprep.subr.bf16.mxu0 0
    %3055 = vmatpush2.bf16.msra.mxu0 0
    %3056 = vmatprep.subr.bf16.mxu0 0
    %3057 = vmatpush2.bf16.msra.mxu0 0
    %3058 = vmatprep.subr.bf16.mxu0 0
    %3059 = vmatpush2.bf16.msra.mxu0 0
    %3060 = vmatprep.subr.bf16.mxu0 0
    %3061 = vmatpush2.bf16.msra.mxu0 0
    %3062 = vmatprep.mubr.bf16.mxu0 0
    %3063 = vmatmul.mubr.bf16.gmra.mxu0 %v2958
    %v3064 = vpop.f32.mrf.mxu0
    %v3065 = vadd.f32 %v2980, %v3064
    %v3066 = vpop.f32.mrf.mxu0
    %v3067 = vpop.f32.mrf.mxu0
    %v3068 = vpop.f32.mrf.mxu0
    %3069 = vdwg.mxu0
    %v3070 = vmax.f32 %v3065, 0.0
    %3071 = vst [vmem:[#allocation13] sm:$0xff] %v3070
    // Predicated region
    $region62: #{tpu_custom_call.1} parent=1 // pred_check
      _
    $region63: #{tpu_custom_call.1} parent=1 // pred_check_branch
      %3073 = sbr.rel (0) target = $region65
    $region64: #{tpu_custom_call.1} parent=1 // pred_region
      %s3075 = ssub.s32 128, 128
      %3076 = vsyncadd [#allocation4], %s3075
      %s3078 = sshll.u32 [#allocation13], 4
      %s3079 = int_to_ptr.vmem [resolvable:$true] %s3078
      %3081 = dma.vmem_to_hbm [thread:$0]  %s3079, 128, %s9, [#allocation4]
    $region65: #{tpu_custom_call.1} parent=1 // pred_fallthru
      _
    // Predicated region
    $region66: #{tpu_custom_call.1} parent=1 // pred_check
      _
    $region67: #{tpu_custom_call.1} parent=1 // pred_check_branch
      %3083 = sbr.rel (0) target = $region69
    $region68: #{tpu_custom_call.1} parent=1 // pred_region
      %3084 = dma.done [#allocation4], 128
    $region69: #{tpu_custom_call.1} parent=1 // pred_fallthru
      _
    %3085 = vsyncpa [#allocation3], 1
    %3086 = vsyncpa [#allocation6], 1
    %3087 = vsyncpa [#allocation9], 1
    %3088 = vsyncpa [#allocation12], 1
    %3089 = vsyncpa [#allocation4], 1

</llo_original>
